<compile_context>
chip_gen: v7x
topology: tpu7x:2x2x1
jax: 0.10.0
libtpu: 0.0.40
codegen_flags: <defaults>
</compile_context>

<pallas_src>
import functools

import jax
import jax.numpy as jnp
from jax.experimental import pallas as pl
from jax.experimental.pallas import tpu as pltpu


def _fused_block_kernel(x_ref, gamma_ref, beta_ref, dw_ref, pw_ref, pwb_ref,
                        o_ref, *, eps, kernel_size, num_layers, matmul_dtype):
    # x_ref:     (Bt, L, D)        activation tile (stays in VMEM for all layers)
    # gamma_ref: (NL, D)           LayerNorm scale per layer
    # beta_ref:  (NL, D)           LayerNorm shift per layer
    # dw_ref:    (NL, K, D)        depthwise taps  (dw[l, k, d] = W_dw[d, 0, k])
    # pw_ref:    (NL, D, D)        pointwise weight, (in, out) layout, matmul dtype
    # pwb_ref:   (NL, D)           pointwise bias
    Bt, L, D = x_ref.shape
    K = kernel_size
    pad = K // 2

    cur = x_ref[...].astype(jnp.float32)                       # (Bt, L, D)
    # Tiny zero slab for the 'same'-padding edges; hoisted out of all loops.
    zeros_edge = jnp.zeros((Bt, pad, D), jnp.float32) if pad > 0 else None

    for layer in range(num_layers):                            # static unroll
        residual = cur

        # --- LayerNorm over channels (eps=1e-6, biased variance) ---
        mean = jnp.mean(cur, axis=-1, keepdims=True)
        cen = cur - mean
        var = jnp.mean(cen * cen, axis=-1, keepdims=True)
        ln = cen * jax.lax.rsqrt(var + eps)
        ln = ln * gamma_ref[layer][None, None, :] + beta_ref[layer][None, None, :]

        # --- depthwise conv along L, zero 'same' padding ---
        # out[b, l, d] = sum_k ln[b, l + k - pad, d] * dw[layer, k, d]
        # Shifted views are built by static slice + concat with the zero edge
        # slab, so padding positions are zero by construction: no iota, no
        # compare, no select -- just one multiply + one add per tap.
        acc = ln * dw_ref[layer, pad][None, None, :]           # centre tap
        for k in range(K):                                     # static unroll
            off = k - pad
            if off == 0:
                continue
            tap = dw_ref[layer, k][None, None, :]
            if off > 0:      # [l] <- ln[l + off], zeros at the tail
                shifted = jnp.concatenate(
                    [ln[:, off:, :], zeros_edge[:, :off, :]], axis=1)
            else:            # [l] <- ln[l + off], zeros at the head
                shifted = jnp.concatenate(
                    [zeros_edge[:, :(-off), :], ln[:, :L + off, :]], axis=1)
            acc = acc + shifted * tap

        # --- pointwise (1x1) conv as one MXU matmul over the packed slab ---
        # Pack batch*seq into M so the systolic array gets a bigger matmul.
        # (Keep L a multiple of 8 so this reshape stays a view.)
        lhs = acc.reshape(Bt * L, D).astype(matmul_dtype)
        rhs = pw_ref[layer]                                    # already matmul dtype
        pw_out = jnp.dot(lhs, rhs, preferred_element_type=jnp.float32)
        pw_out = pw_out + pwb_ref[layer][None, :].astype(jnp.float32)

        # ReLU -> (dropout = identity in eval) -> residual add, stay in f32.
        cur = jnp.maximum(pw_out, 0.0).reshape(Bt, L, D) + residual

    o_ref[...] = cur.astype(o_ref.dtype)


def _weight_spec(block_shape, index_map):
    """BlockSpec for constant-index weights: single-buffered if supported.

    Their index_map always returns block 0, so double-buffering them just
    wastes VMEM.  Fall back to the default spec on jax versions without the
    pipeline_mode / Buffered API.
    """
    try:
        return pl.BlockSpec(block_shape, index_map,
                            pipeline_mode=pl.Buffered(buffer_count=1))
    except (AttributeError, TypeError):
        return pl.BlockSpec(block_shape, index_map)


def _pick_batch_tile(batch, seq, dim, num_layers, kernel_size, pw_itemsize,
                     vmem_budget_bytes=40 * 1024 * 1024, min_grid=2):
    """Largest batch tile whose working set fits the VMEM budget.

    Prefers at least `min_grid` grid steps so both v7x TensorCores get work
    and the pipeline can overlap DMA with compute.  The working-set estimate
    counts the double-buffered in/out tiles plus the ~6-8 live full-tile f32
    temporaries of the unrolled layer loop (~10 slabs total), which keeps the
    choice valid on v7x's 64 MiB VMEM as well as v6e/v5e.
    """
    weight_bytes = num_layers * (dim * dim * pw_itemsize
                                 + (kernel_size + 3) * dim * 4)
    per_batch_row = 10 * seq * dim * 4          # ~10 f32 (L, D) slabs per batch row
    budget = max(vmem_budget_bytes - weight_bytes, per_batch_row)
    fit = max(1, budget // per_batch_row)
    target = min(batch, int(fit))
    if batch >= min_grid:
        target = min(target, max(1, batch // min_grid))
    bt = max(1, int(target))
    while batch % bt:
        bt -= 1
    return bt


def depthwise_separable_conv_block(x, gammas, betas, dw, pw, pwb, *,
                                   eps=1e-6, matmul_dtype=jnp.bfloat16,
                                   batch_tile=None,
                                   vmem_limit_bytes=64 * 1024 * 1024):
    """Fused DepthwiseSeparableConvBlock forward.

    x:      (B, L, D) activations  (for best perf use D a multiple of 128 and
                                    L a multiple of 8; correctness holds anyway)
    gammas: (NL, D), betas: (NL, D)   LayerNorm affine params per layer
    dw:     (NL, K, D)                depthwise taps  (PyTorch (D,1,K) transposed)
    pw:     (NL, D, D)                pointwise weight, (in, out) layout (W.T)
    pwb:    (NL, D)                   pointwise bias
    """
    B, L, D = x.shape
    NL, K, _ = dw.shape

    # Pre-cast the pointwise weights to the MXU operand dtype ONCE here:
    # halves their DMA bytes / VMEM footprint and removes the per-grid-step
    # in-kernel cast.
    pw = pw.astype(matmul_dtype)

    if batch_tile is None:
        batch_tile = _pick_batch_tile(B, L, D, NL, K, pw.dtype.itemsize)
    assert B % batch_tile == 0
    num_tiles = B // batch_tile

    kernel = functools.partial(
        _fused_block_kernel, eps=eps, kernel_size=K, num_layers=NL,
        matmul_dtype=matmul_dtype)

    # Advisory cost estimate so XLA schedules around the fused custom call.
    flops = NL * (2 * B * L * D * D + 2 * B * L * D * K)
    weight_bytes = (gammas.size + betas.size + dw.size + pwb.size) * 4 \
        + pw.size * pw.dtype.itemsize
    cost = pl.CostEstimate(
        flops=int(flops),
        transcendentals=int(NL * B * L),
        bytes_accessed=int(2 * B * L * D * 4 + weight_bytes),
    )

    return pl.pallas_call(
        kernel,
        out_shape=jax.ShapeDtypeStruct((B, L, D), x.dtype),
        grid_spec=pltpu.PrefetchScalarGridSpec(
            num_scalar_prefetch=0,
            grid=(num_tiles,),
            in_specs=[
                pl.BlockSpec((batch_tile, L, D), lambda b: (b, 0, 0)),   # x
                _weight_spec((NL, D), lambda b: (0, 0)),                 # gamma
                _weight_spec((NL, D), lambda b: (0, 0)),                 # beta
                _weight_spec((NL, K, D), lambda b: (0, 0, 0)),           # dw taps
                _weight_spec((NL, D, D), lambda b: (0, 0, 0)),           # pw weight
                _weight_spec((NL, D), lambda b: (0, 0)),                 # pw bias
            ],
            out_specs=pl.BlockSpec((batch_tile, L, D), lambda b: (b, 0, 0)),
        ),
        compiler_params=pltpu.CompilerParams(
            dimension_semantics=("parallel",),
            vmem_limit_bytes=vmem_limit_bytes),
        cost_estimate=cost,
    )(x, gammas, betas, dw, pw, pwb)


# ------------------------- pure-JAX reference -------------------------
def _ref_block(x, gammas, betas, dw, pw, pwb, eps=1e-6):
    out = x
    NL, K, _ = dw.shape
    pad = K // 2
    L = x.shape[1]
    for i in range(NL):
        residual = out
        mean = out.mean(-1, keepdims=True)
        var = ((out - mean) ** 2).mean(-1, keepdims=True)
        ln = (out - mean) / jnp.sqrt(var + eps) * gammas[i] + betas[i]
        lnp = jnp.pad(ln, ((0, 0), (pad, pad), (0, 0)))
        acc = sum(lnp[:, k:k + L, :] * dw[i, k][None, None, :]
                  for k in range(K))
        mm = jnp.dot(acc, pw[i], precision=jax.lax.Precision.HIGHEST)
        out = jnp.maximum(mm + pwb[i], 0.0) + residual
    return out


def _init_params(key, dim, kernel_size, num_layers):
    """Deterministic synthetic params (shapes match the PyTorch module)."""
    k_dw, k_pw, k_pb, k_g, k_b = jax.random.split(key, 5)
    # PyTorch depthwise weight (dim, 1, K)  -> stored here as (NL, K, dim)
    dw = jax.random.normal(k_dw, (num_layers, kernel_size, dim), jnp.float32) * 0.2
    # PyTorch pointwise weight (dim, dim, 1) -> stored as (in, out) = W.T
    pw = jax.random.normal(k_pw, (num_layers, dim, dim), jnp.float32) * (1.0 / dim ** 0.5)
    pwb = jax.random.normal(k_pb, (num_layers, dim), jnp.float32) * 0.1
    # LayerNorm affine params (perturbed from the default init to exercise them)
    gammas = 1.0 + 0.1 * jax.random.normal(k_g, (num_layers, dim), jnp.float32)
    betas = 0.1 * jax.random.normal(k_b, (num_layers, dim), jnp.float32)
    return gammas, betas, dw, pw, pwb


if __name__ == "__main__":
    B, L, D = 2, 16, 32          # small test shapes; L is a multiple of 8
    kernel_size = 5
    num_layers = 4
    # drop_rate is irrelevant in the deterministic (eval) forward pass.

    key = jax.random.PRNGKey(0)
    kx, kp = jax.random.split(key)
    x = jax.random.normal(kx, (B, L, D), jnp.float32)
    gammas, betas, dw, pw, pwb = _init_params(kp, D, kernel_size, num_layers)

    ref = _ref_block(x, gammas, betas, dw, pw, pwb)

    # 1) f32 matmul path: validates the forward semantics (tight tolerance).
    out_f32 = depthwise_separable_conv_block(
        x, gammas, betas, dw, pw, pwb, matmul_dtype=jnp.float32)
    out_f32 = jax.block_until_ready(out_f32)
    assert out_f32.shape == (B, L, D)
    assert jnp.allclose(out_f32, ref, atol=2e-3, rtol=2e-3), (
        float(jnp.max(jnp.abs(out_f32 - ref))))

    # 2) bf16-operand matmul path (default / fast MXU path): looser tolerance.
    out_bf16 = depthwise_separable_conv_block(x, gammas, betas, dw, pw, pwb)
    out_bf16 = jax.block_until_ready(out_bf16)
    assert out_bf16.shape == (B, L, D)
    assert jnp.allclose(out_bf16, ref, atol=5e-2, rtol=5e-2), (
        float(jnp.max(jnp.abs(out_bf16 - ref))))

    print("KERNEL_OK")
</pallas_src>

<mosaic_0001>
module attributes {stable_mosaic.version = 11 : i64} {
  func.func @_fused_block_kernel(%arg0: i32, %arg1: memref<1x16x32xf32, #tpu.memory_space<vmem>>, %arg2: memref<4x32xf32, #tpu.memory_space<vmem>>, %arg3: memref<4x32xf32, #tpu.memory_space<vmem>>, %arg4: memref<4x5x32xf32, #tpu.memory_space<vmem>>, %arg5: memref<4x32x32xf32, #tpu.memory_space<vmem>>, %arg6: memref<4x32xf32, #tpu.memory_space<vmem>>, %arg7: memref<1x16x32xf32, #tpu.memory_space<vmem>>) attributes {dimension_semantics = [#tpu.dimension_semantics<parallel>], iteration_bounds = array<i64: 2>, scalar_prefetch = 0 : i64, scratch_operands = 0 : i64, tpu.core_type = #tpu.core_type<tc>, window_params = [{transform_indices = @transform_0, window_bounds = array<i64: 1, 16, 32>}, {pipeline_mode = #tpu.pipeline_mode<synchronous>, transform_indices = @transform_1, window_bounds = array<i64: 4, 32>}, {pipeline_mode = #tpu.pipeline_mode<synchronous>, transform_indices = @transform_2, window_bounds = array<i64: 4, 32>}, {pipeline_mode = #tpu.pipeline_mode<synchronous>, transform_indices = @transform_3, window_bounds = array<i64: 4, 5, 32>}, {pipeline_mode = #tpu.pipeline_mode<synchronous>, transform_indices = @transform_4, window_bounds = array<i64: 4, 32, 32>}, {pipeline_mode = #tpu.pipeline_mode<synchronous>, transform_indices = @transform_5, window_bounds = array<i64: 4, 32>}, {transform_indices = @transform_6, window_bounds = array<i64: 1, 16, 32>}]} {
    %c0 = arith.constant 0 : index
    %c0_0 = arith.constant 0 : index
    %c0_1 = arith.constant 0 : index
    %0 = vector.load %arg1[%c0, %c0_0, %c0_1] : memref<1x16x32xf32, #tpu.memory_space<vmem>>, vector<1x16x32xf32>
    %cst = arith.constant 0.000000e+00 : f32
    %1 = vector.broadcast %cst : f32 to vector<1x2x32xf32>
    %cst_2 = arith.constant dense<0.000000e+00> : vector<1x16xf32>
    %2 = vector.multi_reduction <add>, %0, %cst_2 [2] : vector<1x16x32xf32> to vector<1x16xf32>
    %3 = vector.shape_cast %2 : vector<1x16xf32> to vector<1x16x1xf32>
    %cst_3 = arith.constant 3.200000e+01 : f32
    %4 = vector.broadcast %cst_3 : f32 to vector<1x16x1xf32>
    %5 = arith.divf %3, %4 : vector<1x16x1xf32>
    %6 = vector.broadcast %5 : vector<1x16x1xf32> to vector<1x16x32xf32>
    %7 = arith.subf %0, %6 : vector<1x16x32xf32>
    %8 = arith.mulf %7, %7 : vector<1x16x32xf32>
    %cst_4 = arith.constant dense<0.000000e+00> : vector<1x16xf32>
    %9 = vector.multi_reduction <add>, %8, %cst_4 [2] : vector<1x16x32xf32> to vector<1x16xf32>
    %10 = vector.shape_cast %9 : vector<1x16xf32> to vector<1x16x1xf32>
    %cst_5 = arith.constant 3.200000e+01 : f32
    %11 = vector.broadcast %cst_5 : f32 to vector<1x16x1xf32>
    %12 = arith.divf %10, %11 : vector<1x16x1xf32>
    %cst_6 = arith.constant 9.99999997E-7 : f32
    %13 = vector.broadcast %cst_6 : f32 to vector<1x16x1xf32>
    %14 = arith.addf %12, %13 : vector<1x16x1xf32>
    %15 = math.rsqrt %14 : vector<1x16x1xf32>
    %16 = vector.broadcast %15 : vector<1x16x1xf32> to vector<1x16x32xf32>
    %17 = arith.mulf %7, %16 : vector<1x16x32xf32>
    %c0_7 = arith.constant 0 : index
    %c0_8 = arith.constant 0 : index
    %18 = vector.load %arg2[%c0_7, %c0_8] : memref<4x32xf32, #tpu.memory_space<vmem>>, vector<1x32xf32>
    %19 = vector.shape_cast %18 : vector<1x32xf32> to vector<32xf32>
    %20 = vector.shape_cast %19 : vector<32xf32> to vector<1x1x32xf32>
    %21 = vector.broadcast %20 : vector<1x1x32xf32> to vector<1x16x32xf32>
    %22 = arith.mulf %17, %21 : vector<1x16x32xf32>
    %c0_9 = arith.constant 0 : index
    %c0_10 = arith.constant 0 : index
    %23 = vector.load %arg3[%c0_9, %c0_10] : memref<4x32xf32, #tpu.memory_space<vmem>>, vector<1x32xf32>
    %24 = vector.shape_cast %23 : vector<1x32xf32> to vector<32xf32>
    %25 = vector.shape_cast %24 : vector<32xf32> to vector<1x1x32xf32>
    %26 = vector.broadcast %25 : vector<1x1x32xf32> to vector<1x16x32xf32>
    %27 = arith.addf %22, %26 : vector<1x16x32xf32>
    %c0_11 = arith.constant 0 : index
    %c2 = arith.constant 2 : index
    %c0_12 = arith.constant 0 : index
    %28 = vector.load %arg4[%c0_11, %c2, %c0_12] : memref<4x5x32xf32, #tpu.memory_space<vmem>>, vector<1x1x32xf32>
    %29 = vector.shape_cast %28 : vector<1x1x32xf32> to vector<32xf32>
    %30 = vector.shape_cast %29 : vector<32xf32> to vector<1x1x32xf32>
    %31 = vector.broadcast %30 : vector<1x1x32xf32> to vector<1x16x32xf32>
    %32 = arith.mulf %27, %31 : vector<1x16x32xf32>
    %c0_13 = arith.constant 0 : index
    %c0_14 = arith.constant 0 : index
    %c0_15 = arith.constant 0 : index
    %33 = vector.load %arg4[%c0_13, %c0_14, %c0_15] : memref<4x5x32xf32, #tpu.memory_space<vmem>>, vector<1x1x32xf32>
    %34 = vector.shape_cast %33 : vector<1x1x32xf32> to vector<32xf32>
    %35 = vector.shape_cast %34 : vector<32xf32> to vector<1x1x32xf32>
    %36 = vector.extract_strided_slice %27 {offsets = [0, 0, 0], sizes = [1, 14, 32], strides = [1, 1, 1]} : vector<1x16x32xf32> to vector<1x14x32xf32>
    %37 = tpu.concatenate %1, %36 in 1 : vector<1x2x32xf32>, vector<1x14x32xf32> -> vector<1x16x32xf32>
    %38 = vector.broadcast %35 : vector<1x1x32xf32> to vector<1x16x32xf32>
    %39 = arith.mulf %37, %38 : vector<1x16x32xf32>
    %40 = arith.addf %32, %39 : vector<1x16x32xf32>
    %c0_16 = arith.constant 0 : index
    %c1 = arith.constant 1 : index
    %c0_17 = arith.constant 0 : index
    %41 = vector.load %arg4[%c0_16, %c1, %c0_17] : memref<4x5x32xf32, #tpu.memory_space<vmem>>, vector<1x1x32xf32>
    %42 = vector.shape_cast %41 : vector<1x1x32xf32> to vector<32xf32>
    %43 = vector.shape_cast %42 : vector<32xf32> to vector<1x1x32xf32>
    %44 = vector.extract_strided_slice %1 {offsets = [0, 0, 0], sizes = [1, 1, 32], strides = [1, 1, 1]} : vector<1x2x32xf32> to vector<1x1x32xf32>
    %45 = vector.extract_strided_slice %27 {offsets = [0, 0, 0], sizes = [1, 15, 32], strides = [1, 1, 1]} : vector<1x16x32xf32> to vector<1x15x32xf32>
    %46 = tpu.concatenate %44, %45 in 1 : vector<1x1x32xf32>, vector<1x15x32xf32> -> vector<1x16x32xf32>
    %47 = vector.broadcast %43 : vector<1x1x32xf32> to vector<1x16x32xf32>
    %48 = arith.mulf %46, %47 : vector<1x16x32xf32>
    %49 = arith.addf %40, %48 : vector<1x16x32xf32>
    %c0_18 = arith.constant 0 : index
    %c3 = arith.constant 3 : index
    %c0_19 = arith.constant 0 : index
    %50 = vector.load %arg4[%c0_18, %c3, %c0_19] : memref<4x5x32xf32, #tpu.memory_space<vmem>>, vector<1x1x32xf32>
    %51 = vector.shape_cast %50 : vector<1x1x32xf32> to vector<32xf32>
    %52 = vector.shape_cast %51 : vector<32xf32> to vector<1x1x32xf32>
    %53 = vector.extract_strided_slice %27 {offsets = [0, 1, 0], sizes = [1, 15, 32], strides = [1, 1, 1]} : vector<1x16x32xf32> to vector<1x15x32xf32>
    %54 = vector.extract_strided_slice %1 {offsets = [0, 0, 0], sizes = [1, 1, 32], strides = [1, 1, 1]} : vector<1x2x32xf32> to vector<1x1x32xf32>
    %55 = tpu.concatenate %53, %54 in 1 : vector<1x15x32xf32>, vector<1x1x32xf32> -> vector<1x16x32xf32>
    %56 = vector.broadcast %52 : vector<1x1x32xf32> to vector<1x16x32xf32>
    %57 = arith.mulf %55, %56 : vector<1x16x32xf32>
    %58 = arith.addf %49, %57 : vector<1x16x32xf32>
    %c0_20 = arith.constant 0 : index
    %c4 = arith.constant 4 : index
    %c0_21 = arith.constant 0 : index
    %59 = vector.load %arg4[%c0_20, %c4, %c0_21] : memref<4x5x32xf32, #tpu.memory_space<vmem>>, vector<1x1x32xf32>
    %60 = vector.shape_cast %59 : vector<1x1x32xf32> to vector<32xf32>
    %61 = vector.shape_cast %60 : vector<32xf32> to vector<1x1x32xf32>
    %62 = vector.extract_strided_slice %27 {offsets = [0, 2, 0], sizes = [1, 14, 32], strides = [1, 1, 1]} : vector<1x16x32xf32> to vector<1x14x32xf32>
    %63 = tpu.concatenate %62, %1 in 1 : vector<1x14x32xf32>, vector<1x2x32xf32> -> vector<1x16x32xf32>
    %64 = vector.broadcast %61 : vector<1x1x32xf32> to vector<1x16x32xf32>
    %65 = arith.mulf %63, %64 : vector<1x16x32xf32>
    %66 = arith.addf %58, %65 : vector<1x16x32xf32>
    %67 = vector.shape_cast %66 : vector<1x16x32xf32> to vector<16x32xf32>
    %c0_22 = arith.constant 0 : index
    %c0_23 = arith.constant 0 : index
    %c0_24 = arith.constant 0 : index
    %68 = vector.load %arg5[%c0_22, %c0_23, %c0_24] : memref<4x32x32xf32, #tpu.memory_space<vmem>>, vector<1x32x32xf32>
    %69 = vector.shape_cast %68 : vector<1x32x32xf32> to vector<32x32xf32>
    %cst_25 = arith.constant dense<0.000000e+00> : vector<16x32xf32>
    %70 = tpu.matmul %67, %69, %cst_25 {dimension_numbers = #tpu.dot_dimension_numbers<[1], [0], [0], [1], [0, 0, 1, 1], [], []>} : vector<16x32xf32>, vector<32x32xf32>, vector<16x32xf32> -> vector<16x32xf32>
    %c0_26 = arith.constant 0 : index
    %c0_27 = arith.constant 0 : index
    %71 = vector.load %arg6[%c0_26, %c0_27] : memref<4x32xf32, #tpu.memory_space<vmem>>, vector<1x32xf32>
    %72 = vector.shape_cast %71 : vector<1x32xf32> to vector<32xf32>
    %73 = vector.shape_cast %72 : vector<32xf32> to vector<1x32xf32>
    %74 = vector.broadcast %73 : vector<1x32xf32> to vector<16x32xf32>
    %75 = arith.addf %70, %74 : vector<16x32xf32>
    %cst_28 = arith.constant 0.000000e+00 : f32
    %76 = vector.broadcast %cst_28 : f32 to vector<16x32xf32>
    %77 = arith.maximumf %75, %76 : vector<16x32xf32>
    %78 = vector.shape_cast %77 : vector<16x32xf32> to vector<1x16x32xf32>
    %79 = arith.addf %78, %0 : vector<1x16x32xf32>
    %cst_29 = arith.constant dense<0.000000e+00> : vector<1x16xf32>
    %80 = vector.multi_reduction <add>, %79, %cst_29 [2] : vector<1x16x32xf32> to vector<1x16xf32>
    %81 = vector.shape_cast %80 : vector<1x16xf32> to vector<1x16x1xf32>
    %cst_30 = arith.constant 3.200000e+01 : f32
    %82 = vector.broadcast %cst_30 : f32 to vector<1x16x1xf32>
    %83 = arith.divf %81, %82 : vector<1x16x1xf32>
    %84 = vector.broadcast %83 : vector<1x16x1xf32> to vector<1x16x32xf32>
    %85 = arith.subf %79, %84 : vector<1x16x32xf32>
    %86 = arith.mulf %85, %85 : vector<1x16x32xf32>
    %cst_31 = arith.constant dense<0.000000e+00> : vector<1x16xf32>
    %87 = vector.multi_reduction <add>, %86, %cst_31 [2] : vector<1x16x32xf32> to vector<1x16xf32>
    %88 = vector.shape_cast %87 : vector<1x16xf32> to vector<1x16x1xf32>
    %cst_32 = arith.constant 3.200000e+01 : f32
    %89 = vector.broadcast %cst_32 : f32 to vector<1x16x1xf32>
    %90 = arith.divf %88, %89 : vector<1x16x1xf32>
    %cst_33 = arith.constant 9.99999997E-7 : f32
    %91 = vector.broadcast %cst_33 : f32 to vector<1x16x1xf32>
    %92 = arith.addf %90, %91 : vector<1x16x1xf32>
    %93 = math.rsqrt %92 : vector<1x16x1xf32>
    %94 = vector.broadcast %93 : vector<1x16x1xf32> to vector<1x16x32xf32>
    %95 = arith.mulf %85, %94 : vector<1x16x32xf32>
    %c1_34 = arith.constant 1 : index
    %c0_35 = arith.constant 0 : index
    %96 = vector.load %arg2[%c1_34, %c0_35] : memref<4x32xf32, #tpu.memory_space<vmem>>, vector<1x32xf32>
    %97 = vector.shape_cast %96 : vector<1x32xf32> to vector<32xf32>
    %98 = vector.shape_cast %97 : vector<32xf32> to vector<1x1x32xf32>
    %99 = vector.broadcast %98 : vector<1x1x32xf32> to vector<1x16x32xf32>
    %100 = arith.mulf %95, %99 : vector<1x16x32xf32>
    %c1_36 = arith.constant 1 : index
    %c0_37 = arith.constant 0 : index
    %101 = vector.load %arg3[%c1_36, %c0_37] : memref<4x32xf32, #tpu.memory_space<vmem>>, vector<1x32xf32>
    %102 = vector.shape_cast %101 : vector<1x32xf32> to vector<32xf32>
    %103 = vector.shape_cast %102 : vector<32xf32> to vector<1x1x32xf32>
    %104 = vector.broadcast %103 : vector<1x1x32xf32> to vector<1x16x32xf32>
    %105 = arith.addf %100, %104 : vector<1x16x32xf32>
    %c1_38 = arith.constant 1 : index
    %c2_39 = arith.constant 2 : index
    %c0_40 = arith.constant 0 : index
    %106 = vector.load %arg4[%c1_38, %c2_39, %c0_40] : memref<4x5x32xf32, #tpu.memory_space<vmem>>, vector<1x1x32xf32>
    %107 = vector.shape_cast %106 : vector<1x1x32xf32> to vector<32xf32>
    %108 = vector.shape_cast %107 : vector<32xf32> to vector<1x1x32xf32>
    %109 = vector.broadcast %108 : vector<1x1x32xf32> to vector<1x16x32xf32>
    %110 = arith.mulf %105, %109 : vector<1x16x32xf32>
    %c1_41 = arith.constant 1 : index
    %c0_42 = arith.constant 0 : index
    %c0_43 = arith.constant 0 : index
    %111 = vector.load %arg4[%c1_41, %c0_42, %c0_43] : memref<4x5x32xf32, #tpu.memory_space<vmem>>, vector<1x1x32xf32>
    %112 = vector.shape_cast %111 : vector<1x1x32xf32> to vector<32xf32>
    %113 = vector.shape_cast %112 : vector<32xf32> to vector<1x1x32xf32>
    %114 = vector.extract_strided_slice %105 {offsets = [0, 0, 0], sizes = [1, 14, 32], strides = [1, 1, 1]} : vector<1x16x32xf32> to vector<1x14x32xf32>
    %115 = tpu.concatenate %1, %114 in 1 : vector<1x2x32xf32>, vector<1x14x32xf32> -> vector<1x16x32xf32>
    %116 = vector.broadcast %113 : vector<1x1x32xf32> to vector<1x16x32xf32>
    %117 = arith.mulf %115, %116 : vector<1x16x32xf32>
    %118 = arith.addf %110, %117 : vector<1x16x32xf32>
    %c1_44 = arith.constant 1 : index
    %c1_45 = arith.constant 1 : index
    %c0_46 = arith.constant 0 : index
    %119 = vector.load %arg4[%c1_44, %c1_45, %c0_46] : memref<4x5x32xf32, #tpu.memory_space<vmem>>, vector<1x1x32xf32>
    %120 = vector.shape_cast %119 : vector<1x1x32xf32> to vector<32xf32>
    %121 = vector.shape_cast %120 : vector<32xf32> to vector<1x1x32xf32>
    %122 = vector.extract_strided_slice %1 {offsets = [0, 0, 0], sizes = [1, 1, 32], strides = [1, 1, 1]} : vector<1x2x32xf32> to vector<1x1x32xf32>
    %123 = vector.extract_strided_slice %105 {offsets = [0, 0, 0], sizes = [1, 15, 32], strides = [1, 1, 1]} : vector<1x16x32xf32> to vector<1x15x32xf32>
    %124 = tpu.concatenate %122, %123 in 1 : vector<1x1x32xf32>, vector<1x15x32xf32> -> vector<1x16x32xf32>
    %125 = vector.broadcast %121 : vector<1x1x32xf32> to vector<1x16x32xf32>
    %126 = arith.mulf %124, %125 : vector<1x16x32xf32>
    %127 = arith.addf %118, %126 : vector<1x16x32xf32>
    %c1_47 = arith.constant 1 : index
    %c3_48 = arith.constant 3 : index
    %c0_49 = arith.constant 0 : index
    %128 = vector.load %arg4[%c1_47, %c3_48, %c0_49] : memref<4x5x32xf32, #tpu.memory_space<vmem>>, vector<1x1x32xf32>
    %129 = vector.shape_cast %128 : vector<1x1x32xf32> to vector<32xf32>
    %130 = vector.shape_cast %129 : vector<32xf32> to vector<1x1x32xf32>
    %131 = vector.extract_strided_slice %105 {offsets = [0, 1, 0], sizes = [1, 15, 32], strides = [1, 1, 1]} : vector<1x16x32xf32> to vector<1x15x32xf32>
    %132 = vector.extract_strided_slice %1 {offsets = [0, 0, 0], sizes = [1, 1, 32], strides = [1, 1, 1]} : vector<1x2x32xf32> to vector<1x1x32xf32>
    %133 = tpu.concatenate %131, %132 in 1 : vector<1x15x32xf32>, vector<1x1x32xf32> -> vector<1x16x32xf32>
    %134 = vector.broadcast %130 : vector<1x1x32xf32> to vector<1x16x32xf32>
    %135 = arith.mulf %133, %134 : vector<1x16x32xf32>
    %136 = arith.addf %127, %135 : vector<1x16x32xf32>
    %c1_50 = arith.constant 1 : index
    %c4_51 = arith.constant 4 : index
    %c0_52 = arith.constant 0 : index
    %137 = vector.load %arg4[%c1_50, %c4_51, %c0_52] : memref<4x5x32xf32, #tpu.memory_space<vmem>>, vector<1x1x32xf32>
    %138 = vector.shape_cast %137 : vector<1x1x32xf32> to vector<32xf32>
    %139 = vector.shape_cast %138 : vector<32xf32> to vector<1x1x32xf32>
    %140 = vector.extract_strided_slice %105 {offsets = [0, 2, 0], sizes = [1, 14, 32], strides = [1, 1, 1]} : vector<1x16x32xf32> to vector<1x14x32xf32>
    %141 = tpu.concatenate %140, %1 in 1 : vector<1x14x32xf32>, vector<1x2x32xf32> -> vector<1x16x32xf32>
    %142 = vector.broadcast %139 : vector<1x1x32xf32> to vector<1x16x32xf32>
    %143 = arith.mulf %141, %142 : vector<1x16x32xf32>
    %144 = arith.addf %136, %143 : vector<1x16x32xf32>
    %145 = vector.shape_cast %144 : vector<1x16x32xf32> to vector<16x32xf32>
    %c1_53 = arith.constant 1 : index
    %c0_54 = arith.constant 0 : index
    %c0_55 = arith.constant 0 : index
    %146 = vector.load %arg5[%c1_53, %c0_54, %c0_55] : memref<4x32x32xf32, #tpu.memory_space<vmem>>, vector<1x32x32xf32>
    %147 = vector.shape_cast %146 : vector<1x32x32xf32> to vector<32x32xf32>
    %cst_56 = arith.constant dense<0.000000e+00> : vector<16x32xf32>
    %148 = tpu.matmul %145, %147, %cst_56 {dimension_numbers = #tpu.dot_dimension_numbers<[1], [0], [0], [1], [0, 0, 1, 1], [], []>} : vector<16x32xf32>, vector<32x32xf32>, vector<16x32xf32> -> vector<16x32xf32>
    %c1_57 = arith.constant 1 : index
    %c0_58 = arith.constant 0 : index
    %149 = vector.load %arg6[%c1_57, %c0_58] : memref<4x32xf32, #tpu.memory_space<vmem>>, vector<1x32xf32>
    %150 = vector.shape_cast %149 : vector<1x32xf32> to vector<32xf32>
    %151 = vector.shape_cast %150 : vector<32xf32> to vector<1x32xf32>
    %152 = vector.broadcast %151 : vector<1x32xf32> to vector<16x32xf32>
    %153 = arith.addf %148, %152 : vector<16x32xf32>
    %cst_59 = arith.constant 0.000000e+00 : f32
    %154 = vector.broadcast %cst_59 : f32 to vector<16x32xf32>
    %155 = arith.maximumf %153, %154 : vector<16x32xf32>
    %156 = vector.shape_cast %155 : vector<16x32xf32> to vector<1x16x32xf32>
    %157 = arith.addf %156, %79 : vector<1x16x32xf32>
    %cst_60 = arith.constant dense<0.000000e+00> : vector<1x16xf32>
    %158 = vector.multi_reduction <add>, %157, %cst_60 [2] : vector<1x16x32xf32> to vector<1x16xf32>
    %159 = vector.shape_cast %158 : vector<1x16xf32> to vector<1x16x1xf32>
    %cst_61 = arith.constant 3.200000e+01 : f32
    %160 = vector.broadcast %cst_61 : f32 to vector<1x16x1xf32>
    %161 = arith.divf %159, %160 : vector<1x16x1xf32>
    %162 = vector.broadcast %161 : vector<1x16x1xf32> to vector<1x16x32xf32>
    %163 = arith.subf %157, %162 : vector<1x16x32xf32>
    %164 = arith.mulf %163, %163 : vector<1x16x32xf32>
    %cst_62 = arith.constant dense<0.000000e+00> : vector<1x16xf32>
    %165 = vector.multi_reduction <add>, %164, %cst_62 [2] : vector<1x16x32xf32> to vector<1x16xf32>
    %166 = vector.shape_cast %165 : vector<1x16xf32> to vector<1x16x1xf32>
    %cst_63 = arith.constant 3.200000e+01 : f32
    %167 = vector.broadcast %cst_63 : f32 to vector<1x16x1xf32>
    %168 = arith.divf %166, %167 : vector<1x16x1xf32>
    %cst_64 = arith.constant 9.99999997E-7 : f32
    %169 = vector.broadcast %cst_64 : f32 to vector<1x16x1xf32>
    %170 = arith.addf %168, %169 : vector<1x16x1xf32>
    %171 = math.rsqrt %170 : vector<1x16x1xf32>
    %172 = vector.broadcast %171 : vector<1x16x1xf32> to vector<1x16x32xf32>
    %173 = arith.mulf %163, %172 : vector<1x16x32xf32>
    %c2_65 = arith.constant 2 : index
    %c0_66 = arith.constant 0 : index
    %174 = vector.load %arg2[%c2_65, %c0_66] : memref<4x32xf32, #tpu.memory_space<vmem>>, vector<1x32xf32>
    %175 = vector.shape_cast %174 : vector<1x32xf32> to vector<32xf32>
    %176 = vector.shape_cast %175 : vector<32xf32> to vector<1x1x32xf32>
    %177 = vector.broadcast %176 : vector<1x1x32xf32> to vector<1x16x32xf32>
    %178 = arith.mulf %173, %177 : vector<1x16x32xf32>
    %c2_67 = arith.constant 2 : index
    %c0_68 = arith.constant 0 : index
    %179 = vector.load %arg3[%c2_67, %c0_68] : memref<4x32xf32, #tpu.memory_space<vmem>>, vector<1x32xf32>
    %180 = vector.shape_cast %179 : vector<1x32xf32> to vector<32xf32>
    %181 = vector.shape_cast %180 : vector<32xf32> to vector<1x1x32xf32>
    %182 = vector.broadcast %181 : vector<1x1x32xf32> to vector<1x16x32xf32>
    %183 = arith.addf %178, %182 : vector<1x16x32xf32>
    %c2_69 = arith.constant 2 : index
    %c2_70 = arith.constant 2 : index
    %c0_71 = arith.constant 0 : index
    %184 = vector.load %arg4[%c2_69, %c2_70, %c0_71] : memref<4x5x32xf32, #tpu.memory_space<vmem>>, vector<1x1x32xf32>
    %185 = vector.shape_cast %184 : vector<1x1x32xf32> to vector<32xf32>
    %186 = vector.shape_cast %185 : vector<32xf32> to vector<1x1x32xf32>
    %187 = vector.broadcast %186 : vector<1x1x32xf32> to vector<1x16x32xf32>
    %188 = arith.mulf %183, %187 : vector<1x16x32xf32>
    %c2_72 = arith.constant 2 : index
    %c0_73 = arith.constant 0 : index
    %c0_74 = arith.constant 0 : index
    %189 = vector.load %arg4[%c2_72, %c0_73, %c0_74] : memref<4x5x32xf32, #tpu.memory_space<vmem>>, vector<1x1x32xf32>
    %190 = vector.shape_cast %189 : vector<1x1x32xf32> to vector<32xf32>
    %191 = vector.shape_cast %190 : vector<32xf32> to vector<1x1x32xf32>
    %192 = vector.extract_strided_slice %183 {offsets = [0, 0, 0], sizes = [1, 14, 32], strides = [1, 1, 1]} : vector<1x16x32xf32> to vector<1x14x32xf32>
    %193 = tpu.concatenate %1, %192 in 1 : vector<1x2x32xf32>, vector<1x14x32xf32> -> vector<1x16x32xf32>
    %194 = vector.broadcast %191 : vector<1x1x32xf32> to vector<1x16x32xf32>
    %195 = arith.mulf %193, %194 : vector<1x16x32xf32>
    %196 = arith.addf %188, %195 : vector<1x16x32xf32>
    %c2_75 = arith.constant 2 : index
    %c1_76 = arith.constant 1 : index
    %c0_77 = arith.constant 0 : index
    %197 = vector.load %arg4[%c2_75, %c1_76, %c0_77] : memref<4x5x32xf32, #tpu.memory_space<vmem>>, vector<1x1x32xf32>
    %198 = vector.shape_cast %197 : vector<1x1x32xf32> to vector<32xf32>
    %199 = vector.shape_cast %198 : vector<32xf32> to vector<1x1x32xf32>
    %200 = vector.extract_strided_slice %1 {offsets = [0, 0, 0], sizes = [1, 1, 32], strides = [1, 1, 1]} : vector<1x2x32xf32> to vector<1x1x32xf32>
    %201 = vector.extract_strided_slice %183 {offsets = [0, 0, 0], sizes = [1, 15, 32], strides = [1, 1, 1]} : vector<1x16x32xf32> to vector<1x15x32xf32>
    %202 = tpu.concatenate %200, %201 in 1 : vector<1x1x32xf32>, vector<1x15x32xf32> -> vector<1x16x32xf32>
    %203 = vector.broadcast %199 : vector<1x1x32xf32> to vector<1x16x32xf32>
    %204 = arith.mulf %202, %203 : vector<1x16x32xf32>
    %205 = arith.addf %196, %204 : vector<1x16x32xf32>
    %c2_78 = arith.constant 2 : index
    %c3_79 = arith.constant 3 : index
    %c0_80 = arith.constant 0 : index
    %206 = vector.load %arg4[%c2_78, %c3_79, %c0_80] : memref<4x5x32xf32, #tpu.memory_space<vmem>>, vector<1x1x32xf32>
    %207 = vector.shape_cast %206 : vector<1x1x32xf32> to vector<32xf32>
    %208 = vector.shape_cast %207 : vector<32xf32> to vector<1x1x32xf32>
    %209 = vector.extract_strided_slice %183 {offsets = [0, 1, 0], sizes = [1, 15, 32], strides = [1, 1, 1]} : vector<1x16x32xf32> to vector<1x15x32xf32>
    %210 = vector.extract_strided_slice %1 {offsets = [0, 0, 0], sizes = [1, 1, 32], strides = [1, 1, 1]} : vector<1x2x32xf32> to vector<1x1x32xf32>
    %211 = tpu.concatenate %209, %210 in 1 : vector<1x15x32xf32>, vector<1x1x32xf32> -> vector<1x16x32xf32>
    %212 = vector.broadcast %208 : vector<1x1x32xf32> to vector<1x16x32xf32>
    %213 = arith.mulf %211, %212 : vector<1x16x32xf32>
    %214 = arith.addf %205, %213 : vector<1x16x32xf32>
    %c2_81 = arith.constant 2 : index
    %c4_82 = arith.constant 4 : index
    %c0_83 = arith.constant 0 : index
    %215 = vector.load %arg4[%c2_81, %c4_82, %c0_83] : memref<4x5x32xf32, #tpu.memory_space<vmem>>, vector<1x1x32xf32>
    %216 = vector.shape_cast %215 : vector<1x1x32xf32> to vector<32xf32>
    %217 = vector.shape_cast %216 : vector<32xf32> to vector<1x1x32xf32>
    %218 = vector.extract_strided_slice %183 {offsets = [0, 2, 0], sizes = [1, 14, 32], strides = [1, 1, 1]} : vector<1x16x32xf32> to vector<1x14x32xf32>
    %219 = tpu.concatenate %218, %1 in 1 : vector<1x14x32xf32>, vector<1x2x32xf32> -> vector<1x16x32xf32>
    %220 = vector.broadcast %217 : vector<1x1x32xf32> to vector<1x16x32xf32>
    %221 = arith.mulf %219, %220 : vector<1x16x32xf32>
    %222 = arith.addf %214, %221 : vector<1x16x32xf32>
    %223 = vector.shape_cast %222 : vector<1x16x32xf32> to vector<16x32xf32>
    %c2_84 = arith.constant 2 : index
    %c0_85 = arith.constant 0 : index
    %c0_86 = arith.constant 0 : index
    %224 = vector.load %arg5[%c2_84, %c0_85, %c0_86] : memref<4x32x32xf32, #tpu.memory_space<vmem>>, vector<1x32x32xf32>
    %225 = vector.shape_cast %224 : vector<1x32x32xf32> to vector<32x32xf32>
    %cst_87 = arith.constant dense<0.000000e+00> : vector<16x32xf32>
    %226 = tpu.matmul %223, %225, %cst_87 {dimension_numbers = #tpu.dot_dimension_numbers<[1], [0], [0], [1], [0, 0, 1, 1], [], []>} : vector<16x32xf32>, vector<32x32xf32>, vector<16x32xf32> -> vector<16x32xf32>
    %c2_88 = arith.constant 2 : index
    %c0_89 = arith.constant 0 : index
    %227 = vector.load %arg6[%c2_88, %c0_89] : memref<4x32xf32, #tpu.memory_space<vmem>>, vector<1x32xf32>
    %228 = vector.shape_cast %227 : vector<1x32xf32> to vector<32xf32>
    %229 = vector.shape_cast %228 : vector<32xf32> to vector<1x32xf32>
    %230 = vector.broadcast %229 : vector<1x32xf32> to vector<16x32xf32>
    %231 = arith.addf %226, %230 : vector<16x32xf32>
    %cst_90 = arith.constant 0.000000e+00 : f32
    %232 = vector.broadcast %cst_90 : f32 to vector<16x32xf32>
    %233 = arith.maximumf %231, %232 : vector<16x32xf32>
    %234 = vector.shape_cast %233 : vector<16x32xf32> to vector<1x16x32xf32>
    %235 = arith.addf %234, %157 : vector<1x16x32xf32>
    %cst_91 = arith.constant dense<0.000000e+00> : vector<1x16xf32>
    %236 = vector.multi_reduction <add>, %235, %cst_91 [2] : vector<1x16x32xf32> to vector<1x16xf32>
    %237 = vector.shape_cast %236 : vector<1x16xf32> to vector<1x16x1xf32>
    %cst_92 = arith.constant 3.200000e+01 : f32
    %238 = vector.broadcast %cst_92 : f32 to vector<1x16x1xf32>
    %239 = arith.divf %237, %238 : vector<1x16x1xf32>
    %240 = vector.broadcast %239 : vector<1x16x1xf32> to vector<1x16x32xf32>
    %241 = arith.subf %235, %240 : vector<1x16x32xf32>
    %242 = arith.mulf %241, %241 : vector<1x16x32xf32>
    %cst_93 = arith.constant dense<0.000000e+00> : vector<1x16xf32>
    %243 = vector.multi_reduction <add>, %242, %cst_93 [2] : vector<1x16x32xf32> to vector<1x16xf32>
    %244 = vector.shape_cast %243 : vector<1x16xf32> to vector<1x16x1xf32>
    %cst_94 = arith.constant 3.200000e+01 : f32
    %245 = vector.broadcast %cst_94 : f32 to vector<1x16x1xf32>
    %246 = arith.divf %244, %245 : vector<1x16x1xf32>
    %cst_95 = arith.constant 9.99999997E-7 : f32
    %247 = vector.broadcast %cst_95 : f32 to vector<1x16x1xf32>
    %248 = arith.addf %246, %247 : vector<1x16x1xf32>
    %249 = math.rsqrt %248 : vector<1x16x1xf32>
    %250 = vector.broadcast %249 : vector<1x16x1xf32> to vector<1x16x32xf32>
    %251 = arith.mulf %241, %250 : vector<1x16x32xf32>
    %c3_96 = arith.constant 3 : index
    %c0_97 = arith.constant 0 : index
    %252 = vector.load %arg2[%c3_96, %c0_97] : memref<4x32xf32, #tpu.memory_space<vmem>>, vector<1x32xf32>
    %253 = vector.shape_cast %252 : vector<1x32xf32> to vector<32xf32>
    %254 = vector.shape_cast %253 : vector<32xf32> to vector<1x1x32xf32>
    %255 = vector.broadcast %254 : vector<1x1x32xf32> to vector<1x16x32xf32>
    %256 = arith.mulf %251, %255 : vector<1x16x32xf32>
    %c3_98 = arith.constant 3 : index
    %c0_99 = arith.constant 0 : index
    %257 = vector.load %arg3[%c3_98, %c0_99] : memref<4x32xf32, #tpu.memory_space<vmem>>, vector<1x32xf32>
    %258 = vector.shape_cast %257 : vector<1x32xf32> to vector<32xf32>
    %259 = vector.shape_cast %258 : vector<32xf32> to vector<1x1x32xf32>
    %260 = vector.broadcast %259 : vector<1x1x32xf32> to vector<1x16x32xf32>
    %261 = arith.addf %256, %260 : vector<1x16x32xf32>
    %c3_100 = arith.constant 3 : index
    %c2_101 = arith.constant 2 : index
    %c0_102 = arith.constant 0 : index
    %262 = vector.load %arg4[%c3_100, %c2_101, %c0_102] : memref<4x5x32xf32, #tpu.memory_space<vmem>>, vector<1x1x32xf32>
    %263 = vector.shape_cast %262 : vector<1x1x32xf32> to vector<32xf32>
    %264 = vector.shape_cast %263 : vector<32xf32> to vector<1x1x32xf32>
    %265 = vector.broadcast %264 : vector<1x1x32xf32> to vector<1x16x32xf32>
    %266 = arith.mulf %261, %265 : vector<1x16x32xf32>
    %c3_103 = arith.constant 3 : index
    %c0_104 = arith.constant 0 : index
    %c0_105 = arith.constant 0 : index
    %267 = vector.load %arg4[%c3_103, %c0_104, %c0_105] : memref<4x5x32xf32, #tpu.memory_space<vmem>>, vector<1x1x32xf32>
    %268 = vector.shape_cast %267 : vector<1x1x32xf32> to vector<32xf32>
    %269 = vector.shape_cast %268 : vector<32xf32> to vector<1x1x32xf32>
    %270 = vector.extract_strided_slice %261 {offsets = [0, 0, 0], sizes = [1, 14, 32], strides = [1, 1, 1]} : vector<1x16x32xf32> to vector<1x14x32xf32>
    %271 = tpu.concatenate %1, %270 in 1 : vector<1x2x32xf32>, vector<1x14x32xf32> -> vector<1x16x32xf32>
    %272 = vector.broadcast %269 : vector<1x1x32xf32> to vector<1x16x32xf32>
    %273 = arith.mulf %271, %272 : vector<1x16x32xf32>
    %274 = arith.addf %266, %273 : vector<1x16x32xf32>
    %c3_106 = arith.constant 3 : index
    %c1_107 = arith.constant 1 : index
    %c0_108 = arith.constant 0 : index
    %275 = vector.load %arg4[%c3_106, %c1_107, %c0_108] : memref<4x5x32xf32, #tpu.memory_space<vmem>>, vector<1x1x32xf32>
    %276 = vector.shape_cast %275 : vector<1x1x32xf32> to vector<32xf32>
    %277 = vector.shape_cast %276 : vector<32xf32> to vector<1x1x32xf32>
    %278 = vector.extract_strided_slice %1 {offsets = [0, 0, 0], sizes = [1, 1, 32], strides = [1, 1, 1]} : vector<1x2x32xf32> to vector<1x1x32xf32>
    %279 = vector.extract_strided_slice %261 {offsets = [0, 0, 0], sizes = [1, 15, 32], strides = [1, 1, 1]} : vector<1x16x32xf32> to vector<1x15x32xf32>
    %280 = tpu.concatenate %278, %279 in 1 : vector<1x1x32xf32>, vector<1x15x32xf32> -> vector<1x16x32xf32>
    %281 = vector.broadcast %277 : vector<1x1x32xf32> to vector<1x16x32xf32>
    %282 = arith.mulf %280, %281 : vector<1x16x32xf32>
    %283 = arith.addf %274, %282 : vector<1x16x32xf32>
    %c3_109 = arith.constant 3 : index
    %c3_110 = arith.constant 3 : index
    %c0_111 = arith.constant 0 : index
    %284 = vector.load %arg4[%c3_109, %c3_110, %c0_111] : memref<4x5x32xf32, #tpu.memory_space<vmem>>, vector<1x1x32xf32>
    %285 = vector.shape_cast %284 : vector<1x1x32xf32> to vector<32xf32>
    %286 = vector.shape_cast %285 : vector<32xf32> to vector<1x1x32xf32>
    %287 = vector.extract_strided_slice %261 {offsets = [0, 1, 0], sizes = [1, 15, 32], strides = [1, 1, 1]} : vector<1x16x32xf32> to vector<1x15x32xf32>
    %288 = vector.extract_strided_slice %1 {offsets = [0, 0, 0], sizes = [1, 1, 32], strides = [1, 1, 1]} : vector<1x2x32xf32> to vector<1x1x32xf32>
    %289 = tpu.concatenate %287, %288 in 1 : vector<1x15x32xf32>, vector<1x1x32xf32> -> vector<1x16x32xf32>
    %290 = vector.broadcast %286 : vector<1x1x32xf32> to vector<1x16x32xf32>
    %291 = arith.mulf %289, %290 : vector<1x16x32xf32>
    %292 = arith.addf %283, %291 : vector<1x16x32xf32>
    %c3_112 = arith.constant 3 : index
    %c4_113 = arith.constant 4 : index
    %c0_114 = arith.constant 0 : index
    %293 = vector.load %arg4[%c3_112, %c4_113, %c0_114] : memref<4x5x32xf32, #tpu.memory_space<vmem>>, vector<1x1x32xf32>
    %294 = vector.shape_cast %293 : vector<1x1x32xf32> to vector<32xf32>
    %295 = vector.shape_cast %294 : vector<32xf32> to vector<1x1x32xf32>
    %296 = vector.extract_strided_slice %261 {offsets = [0, 2, 0], sizes = [1, 14, 32], strides = [1, 1, 1]} : vector<1x16x32xf32> to vector<1x14x32xf32>
    %297 = tpu.concatenate %296, %1 in 1 : vector<1x14x32xf32>, vector<1x2x32xf32> -> vector<1x16x32xf32>
    %298 = vector.broadcast %295 : vector<1x1x32xf32> to vector<1x16x32xf32>
    %299 = arith.mulf %297, %298 : vector<1x16x32xf32>
    %300 = arith.addf %292, %299 : vector<1x16x32xf32>
    %301 = vector.shape_cast %300 : vector<1x16x32xf32> to vector<16x32xf32>
    %c3_115 = arith.constant 3 : index
    %c0_116 = arith.constant 0 : index
    %c0_117 = arith.constant 0 : index
    %302 = vector.load %arg5[%c3_115, %c0_116, %c0_117] : memref<4x32x32xf32, #tpu.memory_space<vmem>>, vector<1x32x32xf32>
    %303 = vector.shape_cast %302 : vector<1x32x32xf32> to vector<32x32xf32>
    %cst_118 = arith.constant dense<0.000000e+00> : vector<16x32xf32>
    %304 = tpu.matmul %301, %303, %cst_118 {dimension_numbers = #tpu.dot_dimension_numbers<[1], [0], [0], [1], [0, 0, 1, 1], [], []>} : vector<16x32xf32>, vector<32x32xf32>, vector<16x32xf32> -> vector<16x32xf32>
    %c3_119 = arith.constant 3 : index
    %c0_120 = arith.constant 0 : index
    %305 = vector.load %arg6[%c3_119, %c0_120] : memref<4x32xf32, #tpu.memory_space<vmem>>, vector<1x32xf32>
    %306 = vector.shape_cast %305 : vector<1x32xf32> to vector<32xf32>
    %307 = vector.shape_cast %306 : vector<32xf32> to vector<1x32xf32>
    %308 = vector.broadcast %307 : vector<1x32xf32> to vector<16x32xf32>
    %309 = arith.addf %304, %308 : vector<16x32xf32>
    %cst_121 = arith.constant 0.000000e+00 : f32
    %310 = vector.broadcast %cst_121 : f32 to vector<16x32xf32>
    %311 = arith.maximumf %309, %310 : vector<16x32xf32>
    %312 = vector.shape_cast %311 : vector<16x32xf32> to vector<1x16x32xf32>
    %313 = arith.addf %312, %235 : vector<1x16x32xf32>
    %c0_122 = arith.constant 0 : index
    %c0_123 = arith.constant 0 : index
    %c0_124 = arith.constant 0 : index
    %314 = vector.load %arg7[%c0_122, %c0_123, %c0_124] : memref<1x16x32xf32, #tpu.memory_space<vmem>>, vector<1x16x32xf32>
    tpu.vector_store %arg7[%c0_122, %c0_123, %c0_124], %313 {strides = array<i32>} : memref<1x16x32xf32, #tpu.memory_space<vmem>>, vector<1x16x32xf32>,
    return
  }
  func.func @transform_0(%arg0: i32) -> (i32, i32, i32) {
    %c0_i32 = arith.constant 0 : i32
    %c0_i32_0 = arith.constant 0 : i32
    %c0_i32_1 = arith.constant 0 : i32
    return %arg0, %c0_i32, %c0_i32_0 : i32, i32, i32
  }
  func.func @transform_1(%arg0: i32) -> (i32, i32) {
    %c0_i32 = arith.constant 0 : i32
    %c0_i32_0 = arith.constant 0 : i32
    %c0_i32_1 = arith.constant 0 : i32
    return %c0_i32, %c0_i32_0 : i32, i32
  }
  func.func @transform_2(%arg0: i32) -> (i32, i32) {
    %c0_i32 = arith.constant 0 : i32
    %c0_i32_0 = arith.constant 0 : i32
    %c0_i32_1 = arith.constant 0 : i32
    return %c0_i32, %c0_i32_0 : i32, i32
  }
  func.func @transform_3(%arg0: i32) -> (i32, i32, i32) {
    %c0_i32 = arith.constant 0 : i32
    %c0_i32_0 = arith.constant 0 : i32
    %c0_i32_1 = arith.constant 0 : i32
    %c0_i32_2 = arith.constant 0 : i32
    return %c0_i32, %c0_i32_0, %c0_i32_1 : i32, i32, i32
  }
  func.func @transform_4(%arg0: i32) -> (i32, i32, i32) {
    %c0_i32 = arith.constant 0 : i32
    %c0_i32_0 = arith.constant 0 : i32
    %c0_i32_1 = arith.constant 0 : i32
    %c0_i32_2 = arith.constant 0 : i32
    return %c0_i32, %c0_i32_0, %c0_i32_1 : i32, i32, i32
  }
  func.func @transform_5(%arg0: i32) -> (i32, i32) {
    %c0_i32 = arith.constant 0 : i32
    %c0_i32_0 = arith.constant 0 : i32
    %c0_i32_1 = arith.constant 0 : i32
    return %c0_i32, %c0_i32_0 : i32, i32
  }
  func.func @transform_6(%arg0: i32) -> (i32, i32, i32) {
    %c0_i32 = arith.constant 0 : i32
    %c0_i32_0 = arith.constant 0 : i32
    %c0_i32_1 = arith.constant 0 : i32
    return %arg0, %c0_i32, %c0_i32_0 : i32, i32, i32
  }
}

</mosaic_0001>

<llo_original>
// kernel: tpu_custom_call.1
$region0: #{tpu_custom_call.1}
  #allocation0 [shape = 'u32[]', space=smem, size = 0x4, offset = 0x4, fixed_abs, tag = 'smem constant byte address 0x4 - core index']
  #allocation1 [shape = 'u32[144,128]{1,0:T(1,128)}', space=vmem, size = 0x12000, scoped, tag = 'internal scratch']
  %s0 = inlined_call_operand.hbm [shape: f32[2,16,32], index: 0, kind: input, shape index: {}]
  %s1 = inlined_call_operand.hbm [shape: f32[4,32], index: 1, kind: input, shape index: {}]
  %s2 = inlined_call_operand.hbm [shape: f32[4,32], index: 2, kind: input, shape index: {}]
  %s3 = inlined_call_operand.hbm [shape: f32[4,5,32], index: 3, kind: input, shape index: {}]
  %s4 = inlined_call_operand.hbm [shape: f32[4,32,32], index: 4, kind: input, shape index: {}]
  %s5 = inlined_call_operand.hbm [shape: f32[4,32], index: 5, kind: input, shape index: {}]
  %s6 = inlined_call_operand.hbm [shape: f32[2,16,32], index: 6, kind: output, shape index: {}]
  %s7 = sld [smem:[#allocation0]]
  $region81: #{tpu_custom_call.1} parent=0
    _
  %s9 = ssub.s32 1, %s7
  %s10 = scalar_select 0, %s9, %s7
  $region1: #{tpu_custom_call.1} parent=0
    #allocation2 [shape = 'u8[16384]{0}', space=vmem, size = 0x4000, scoped, tag = 'input window, operand 0']
    #allocation3 [shape = 's32[2]{0}', space=sflag, size = 0x8, scoped, tag = 'scoped memory for tpu_custom_call.1']
    #allocation4 [shape = 's32[2]{0}', space=sflag, size = 0x8, scoped, tag = 'scoped memory for tpu_custom_call.1']
    #allocation5 [shape = 'u8[2048]{0}', space=vmem, size = 0x800, scoped, tag = 'input window, operand 1, single buffered']
    #allocation6 [shape = 's32[1]{0}', space=sflag, size = 0x4, scoped, tag = 'scoped memory for tpu_custom_call.1']
    #allocation7 [shape = 'u8[2048]{0}', space=vmem, size = 0x800, scoped, tag = 'input window, operand 2, single buffered']
    #allocation8 [shape = 'u8[16384]{0}', space=vmem, size = 0x4000, scoped, tag = 'input window, operand 3, single buffered']
    #allocation9 [shape = 's32[1]{0}', space=sflag, size = 0x4, scoped, tag = 'scoped memory for tpu_custom_call.1']
    #allocation10 [shape = 'u8[65536]{0}', space=vmem, size = 0x10000, scoped, tag = 'input window, operand 4, single buffered']
    #allocation11 [shape = 'u8[2048]{0}', space=vmem, size = 0x800, scoped, tag = 'input window, operand 5, single buffered']
    #allocation12 [shape = 's32[1]{0}', space=sflag, size = 0x4, scoped, tag = 'scoped memory for tpu_custom_call.1']
    #allocation13 [shape = 'u8[16384]{0}', space=vmem, size = 0x4000, scoped, tag = 'output window, operand 0']
    %11 = vsyncpa [#allocation3], 0
    %s12 = scalar_lea.sflag [#allocation3], 1
    %13 = vsyncpa %s12, 0
    %14 = vsyncpa [#allocation6], 0
    %15 = vsyncpa [#allocation9], 0
    %16 = vsyncpa [#allocation12], 0
    %17 = vsyncpa [#allocation4], 0
    %s18 = scalar_lea.sflag [#allocation4], 1
    %19 = vsyncpa %s18, 0
    loop: start=0, step=1, limit=4
    $region2: #{tpu_custom_call.1} parent=1 // loop_pre_header
      _
    $region3: #{tpu_custom_call.1} parent=1 // loop_header
      %s21 = sphi 0, %s25
      %p22 = scmp.ge.s32.totalorder %s21, 4
      %s31 = sphi 0, %s33
      %s34 = sphi 0, %s31
      %s35 = sphi 0, %s34
      %s51 = sphi 0, %s35
      %s55 = sphi 0, %s55
      %s57 = sphi 0, %s55
      %s58 = sphi 0, %s57
      %s72 = sphi 0, %s58
      %s76 = sphi 0, %s76
      %s78 = sphi 0, %s76
      %s79 = sphi 0, %s78
      %s93 = sphi 0, %s79
      %s97 = sphi 0, %s97
      %s99 = sphi 0, %s97
      %s100 = sphi 0, %s99
      %s114 = sphi 0, %s100
      %s118 = sphi 0, %s118
      %s120 = sphi 0, %s118
      %s121 = sphi 0, %s120
      %s135 = sphi 0, %s121
      %s139 = sphi 0, %s139
      %s141 = sphi 0, %s139
      %s142 = sphi 0, %s141
      %s156 = sphi 0, %s142
      %s162 = sphi 0, %s164
      %s165 = sphi 0, %s162
      %s166 = sphi 0, %s165
      %s182 = sphi 0, %s166
    $region4: #{tpu_custom_call.1} parent=1 // loop_header_branch
      %24 = sbr.rel (%p22) target = $region8
    $region5: #{tpu_custom_call.1} parent=1 // loop_body
      %s26 = ssub.s32 %s21, 1
      %s27 = ssub.s32 %s21, 2
      %s28 = sadd.s32 %s21, 1
      %s29 = ssub.s32 %s21, %s28
      %p30 = scmp.eq.s32.totalorder %s29, 0
      %s32 = sadd.s32 %s31, 1
      %s33 = scalar_select %p30, %s31, %s32
      %p36 = pneg %p30
      %p37 = scmp.eq.s32.totalorder %s21, 1
      %p38 = por %p36, %p37
      %p39 = scmp.ne.s32.totalorder %s31, %s34
      %p40 = scmp.eq.s32.totalorder %s21, 0
      %p41 = por %p39, %p40
      %p42 = scmp.ne.s32.totalorder %s31, %s34
      %p43 = scmp.eq.s32.totalorder %s26, 1
      %p44 = por %p42, %p43
      %p45 = scmp.ne.s32.totalorder %s34, %s35
      %p46 = scmp.eq.s32.totalorder %s26, 0
      %p47 = por %p45, %p46
      %p48 = scmp.ne.s32.totalorder %s34, %s35
      %p49 = scmp.eq.s32.totalorder %s27, 1
      %p50 = por %p48, %p49
      %p52 = scmp.ne.s32.totalorder %s35, %s51
      %p53 = scmp.eq.s32.totalorder %s27, 0
      %p54 = por %p52, %p53
      %s56 = sadd.s32 %s55, 1
      %p59 = scmp.eq.s32.totalorder %s21, 1
      %p60 = scmp.ne.s32.totalorder %s55, %s57
      %p61 = scmp.eq.s32.totalorder %s21, 0
      %p62 = por %p60, %p61
      %p63 = scmp.ne.s32.totalorder %s55, %s57
      %p64 = scmp.eq.s32.totalorder %s26, 1
      %p65 = por %p63, %p64
      %p66 = scmp.ne.s32.totalorder %s57, %s58
      %p67 = scmp.eq.s32.totalorder %s26, 0
      %p68 = por %p66, %p67
      %p69 = scmp.ne.s32.totalorder %s57, %s58
      %p70 = scmp.eq.s32.totalorder %s27, 1
      %p71 = por %p69, %p70
      %p73 = scmp.ne.s32.totalorder %s58, %s72
      %p74 = scmp.eq.s32.totalorder %s27, 0
      %p75 = por %p73, %p74
      %s77 = sadd.s32 %s76, 1
      %p80 = scmp.eq.s32.totalorder %s21, 1
      %p81 = scmp.ne.s32.totalorder %s76, %s78
      %p82 = scmp.eq.s32.totalorder %s21, 0
      %p83 = por %p81, %p82
      %p84 = scmp.ne.s32.totalorder %s76, %s78
      %p85 = scmp.eq.s32.totalorder %s26, 1
      %p86 = por %p84, %p85
      %p87 = scmp.ne.s32.totalorder %s78, %s79
      %p88 = scmp.eq.s32.totalorder %s26, 0
      %p89 = por %p87, %p88
      %p90 = scmp.ne.s32.totalorder %s78, %s79
      %p91 = scmp.eq.s32.totalorder %s27, 1
      %p92 = por %p90, %p91
      %p94 = scmp.ne.s32.totalorder %s79, %s93
      %p95 = scmp.eq.s32.totalorder %s27, 0
      %p96 = por %p94, %p95
      %s98 = sadd.s32 %s97, 1
      %p101 = scmp.eq.s32.totalorder %s21, 1
      %p102 = scmp.ne.s32.totalorder %s97, %s99
      %p103 = scmp.eq.s32.totalorder %s21, 0
      %p104 = por %p102, %p103
      %p105 = scmp.ne.s32.totalorder %s97, %s99
      %p106 = scmp.eq.s32.totalorder %s26, 1
      %p107 = por %p105, %p106
      %p108 = scmp.ne.s32.totalorder %s99, %s100
      %p109 = scmp.eq.s32.totalorder %s26, 0
      %p110 = por %p108, %p109
      %p111 = scmp.ne.s32.totalorder %s99, %s100
      %p112 = scmp.eq.s32.totalorder %s27, 1
      %p113 = por %p111, %p112
      %p115 = scmp.ne.s32.totalorder %s100, %s114
      %p116 = scmp.eq.s32.totalorder %s27, 0
      %p117 = por %p115, %p116
      %s119 = sadd.s32 %s118, 1
      %p122 = scmp.eq.s32.totalorder %s21, 1
      %p123 = scmp.ne.s32.totalorder %s118, %s120
      %p124 = scmp.eq.s32.totalorder %s21, 0
      %p125 = por %p123, %p124
      %p126 = scmp.ne.s32.totalorder %s118, %s120
      %p127 = scmp.eq.s32.totalorder %s26, 1
      %p128 = por %p126, %p127
      %p129 = scmp.ne.s32.totalorder %s120, %s121
      %p130 = scmp.eq.s32.totalorder %s26, 0
      %p131 = por %p129, %p130
      %p132 = scmp.ne.s32.totalorder %s120, %s121
      %p133 = scmp.eq.s32.totalorder %s27, 1
      %p134 = por %p132, %p133
      %p136 = scmp.ne.s32.totalorder %s121, %s135
      %p137 = scmp.eq.s32.totalorder %s27, 0
      %p138 = por %p136, %p137
      %s140 = sadd.s32 %s139, 1
      %p143 = scmp.eq.s32.totalorder %s21, 1
      %p144 = scmp.ne.s32.totalorder %s139, %s141
      %p145 = scmp.eq.s32.totalorder %s21, 0
      %p146 = por %p144, %p145
      %p147 = scmp.ne.s32.totalorder %s139, %s141
      %p148 = scmp.eq.s32.totalorder %s26, 1
      %p149 = por %p147, %p148
      %p150 = scmp.ne.s32.totalorder %s141, %s142
      %p151 = scmp.eq.s32.totalorder %s26, 0
      %p152 = por %p150, %p151
      %p153 = scmp.ne.s32.totalorder %s141, %s142
      %p154 = scmp.eq.s32.totalorder %s27, 1
      %p155 = por %p153, %p154
      %p157 = scmp.ne.s32.totalorder %s142, %s156
      %p158 = scmp.eq.s32.totalorder %s27, 0
      %p159 = por %p157, %p158
      %s160 = ssub.s32 %s21, %s28
      %p161 = scmp.eq.s32.totalorder %s160, 0
      %s163 = sadd.s32 %s162, 1
      %s164 = scalar_select %p161, %s162, %s163
      %p167 = pneg %p161
      %p168 = scmp.eq.s32.totalorder %s21, 1
      %p169 = por %p167, %p168
      %p170 = scmp.ne.s32.totalorder %s162, %s165
      %p171 = scmp.eq.s32.totalorder %s21, 0
      %p172 = por %p170, %p171
      %p173 = scmp.ne.s32.totalorder %s162, %s165
      %p174 = scmp.eq.s32.totalorder %s26, 1
      %p175 = por %p173, %p174
      %p176 = scmp.ne.s32.totalorder %s165, %s166
      %p177 = scmp.eq.s32.totalorder %s26, 0
      %p178 = por %p176, %p177
      %p179 = scmp.ne.s32.totalorder %s165, %s166
      %p180 = scmp.eq.s32.totalorder %s27, 1
      %p181 = por %p179, %p180
      %p183 = scmp.ne.s32.totalorder %s166, %s182
      %p184 = scmp.eq.s32.totalorder %s27, 0
      %p185 = por %p183, %p184
      %p186 = scmp.le.s32.totalorder 1, %s21
      %p187 = scmp.lt.s32.totalorder %s21, 3
      %p188 = pnand %p186, %p187
      %p189 = pneg %p188
      // Predicated region
      $region9: #{tpu_custom_call.1} parent=5 // pred_check
        _
      $region10: #{tpu_custom_call.1} parent=5 // pred_check_branch
        %191 = sbr.rel (%p188) target = $region12
      $region11: #{tpu_custom_call.1} parent=5 // pred_region
        %s192 = ssub.s32 %s21, 1
        // Predicated region
        $region13: #{tpu_custom_call.1} parent=11 // pred_check
          %p193 = pneg %p68
        $region14: #{tpu_custom_call.1} parent=11 // pred_check_branch
          %195 = sbr.rel (%p193) target = $region16
        $region15: #{tpu_custom_call.1} parent=11 // pred_region
          %s197 = ssub.s32 64, 64
          %198 = vsyncadd [#allocation6], %s197
          %s200 = sshll.u32 [#allocation5], 4
          %s201 = int_to_ptr.vmem [resolvable:$true] %s200
          %203 = dma.hbm_to_vmem [thread:$0]  %s1, 64, %s201, [#allocation6]
        $region16: #{tpu_custom_call.1} parent=11 // pred_fallthru
          _
        // Predicated region
        $region17: #{tpu_custom_call.1} parent=11 // pred_check
          %p204 = pneg %p89
        $region18: #{tpu_custom_call.1} parent=11 // pred_check_branch
          %206 = sbr.rel (%p204) target = $region20
        $region19: #{tpu_custom_call.1} parent=11 // pred_region
          %s208 = ssub.s32 64, 64
          %209 = vsyncadd [#allocation6], %s208
          %s211 = sshll.u32 [#allocation7], 4
          %s212 = int_to_ptr.vmem [resolvable:$true] %s211
          %214 = dma.hbm_to_vmem [thread:$0]  %s2, 64, %s212, [#allocation6]
        $region20: #{tpu_custom_call.1} parent=11 // pred_fallthru
          _
        // Predicated region
        $region21: #{tpu_custom_call.1} parent=11 // pred_check
          %p215 = pneg %p110
        $region22: #{tpu_custom_call.1} parent=11 // pred_check_branch
          %217 = sbr.rel (%p215) target = $region24
        $region23: #{tpu_custom_call.1} parent=11 // pred_region
          %s219 = ssub.s32 512, 512
          %220 = vsyncadd [#allocation9], %s219
          %s221 = sshll.u32 [#allocation8], 4
          %s222 = int_to_ptr.vmem [resolvable:$true] %s221
          %227 = dma.hbm_to_vmem [thread:$0]  %s3, 512, %s222, [#allocation9], 128, 128, 8
        $region24: #{tpu_custom_call.1} parent=11 // pred_fallthru
          _
        // Predicated region
        $region25: #{tpu_custom_call.1} parent=11 // pred_check
          %p228 = pneg %p131
        $region26: #{tpu_custom_call.1} parent=11 // pred_check_branch
          %230 = sbr.rel (%p228) target = $region28
        $region27: #{tpu_custom_call.1} parent=11 // pred_region
          %s232 = ssub.s32 2048, 2048
          %233 = vsyncadd [#allocation9], %s232
          %s234 = sshll.u32 [#allocation10], 4
          %s235 = int_to_ptr.vmem [resolvable:$true] %s234
          %240 = dma.hbm_to_vmem [thread:$0]  %s4, 2048, %s235, [#allocation9], 128, 128, 8
        $region28: #{tpu_custom_call.1} parent=11 // pred_fallthru
          _
        // Predicated region
        $region29: #{tpu_custom_call.1} parent=11 // pred_check
          %p241 = pneg %p152
        $region30: #{tpu_custom_call.1} parent=11 // pred_check_branch
          %243 = sbr.rel (%p241) target = $region32
        $region31: #{tpu_custom_call.1} parent=11 // pred_region
          %s245 = ssub.s32 64, 64
          %246 = vsyncadd [#allocation12], %s245
          %s248 = sshll.u32 [#allocation11], 4
          %s249 = int_to_ptr.vmem [resolvable:$true] %s248
          %251 = dma.hbm_to_vmem [thread:$0]  %s5, 64, %s249, [#allocation12]
        $region32: #{tpu_custom_call.1} parent=11 // pred_fallthru
          _
      $region12: #{tpu_custom_call.1} parent=5 // pred_fallthru
        _
      %p252 = scmp.lt.s32.totalorder %s21, 2
      // Predicated region
      $region33: #{tpu_custom_call.1} parent=5 // pred_check
        %p253 = pneg %p252
      $region34: #{tpu_custom_call.1} parent=5 // pred_check_branch
        %255 = sbr.rel (%p253) target = $region36
      $region35: #{tpu_custom_call.1} parent=5 // pred_region
        // Predicated region
        $region37: #{tpu_custom_call.1} parent=35 // pred_check
          %p256 = pneg %p41
        $region38: #{tpu_custom_call.1} parent=35 // pred_check_branch
          %258 = sbr.rel (%p256) target = $region40
        $region39: #{tpu_custom_call.1} parent=35 // pred_region
          %s259 = sand.u32 %s31, 1
          %s260 = scalar_lea.sflag [#allocation3], %s259
          %s261 = sand.u32 %s31, 1
          %s262 = smul.addr %s261, 16
          %s263 = scalar_lea.vmem [#allocation2], %s262
          %s265 = ssub.s32 256, 256
          %266 = vsyncadd %s260, %s265
          %s267 = smul.addr %s21, 2
          %s268 = smul.addr %s267, 128
          %s269 = scalar_lea.hbm %s0, %s268
          %s270 = sshll.u32 %s263, 4
          %s271 = int_to_ptr.vmem [resolvable:$true] %s270
          %276 = dma.hbm_to_vmem [thread:$0]  %s269, 256, %s271, %s260, 128, 128, 8
        $region40: #{tpu_custom_call.1} parent=35 // pred_fallthru
          _
      $region36: #{tpu_custom_call.1} parent=5 // pred_fallthru
        _
      %p277 = scmp.le.s32.totalorder 1, %s21
      %p278 = scmp.lt.s32.totalorder %s21, 3
      %p279 = pnand %p277, %p278
      %p280 = pneg %p279
      // Predicated region
      $region41: #{tpu_custom_call.1} parent=5 // pred_check
        _
      $region42: #{tpu_custom_call.1} parent=5 // pred_check_branch
        %282 = sbr.rel (%p279) target = $region44
      $region43: #{tpu_custom_call.1} parent=5 // pred_region
        %s283 = ssub.s32 %s21, 1
        %s284 = sand.u32 %s34, 1
        %s285 = scalar_lea.sflag [#allocation3], %s284
        %s286 = sand.u32 %s34, 1
        %s287 = smul.addr %s286, 16
        %s288 = scalar_lea.vmem [#allocation2], %s287
        // Predicated region
        $region45: #{tpu_custom_call.1} parent=43 // pred_check
          %p289 = pneg %p47
        $region46: #{tpu_custom_call.1} parent=43 // pred_check_branch
          %291 = sbr.rel (%p289) target = $region48
        $region47: #{tpu_custom_call.1} parent=43 // pred_region
          %292 = dma.done %s285, 256
        $region48: #{tpu_custom_call.1} parent=43 // pred_fallthru
          _
        // Predicated region
        $region49: #{tpu_custom_call.1} parent=43 // pred_check
          %p293 = pneg %p68
        $region50: #{tpu_custom_call.1} parent=43 // pred_check_branch
          %295 = sbr.rel (%p293) target = $region52
        $region51: #{tpu_custom_call.1} parent=43 // pred_region
          %296 = dma.done [#allocation6], 64
        $region52: #{tpu_custom_call.1} parent=43 // pred_fallthru
          _
        // Predicated region
        $region53: #{tpu_custom_call.1} parent=43 // pred_check
          %p297 = pneg %p89
        $region54: #{tpu_custom_call.1} parent=43 // pred_check_branch
          %299 = sbr.rel (%p297) target = $region56
        $region55: #{tpu_custom_call.1} parent=43 // pred_region
          %300 = dma.done [#allocation6], 64
        $region56: #{tpu_custom_call.1} parent=43 // pred_fallthru
          _
        // Predicated region
        $region57: #{tpu_custom_call.1} parent=43 // pred_check
          %p301 = pneg %p110
        $region58: #{tpu_custom_call.1} parent=43 // pred_check_branch
          %303 = sbr.rel (%p301) target = $region60
        $region59: #{tpu_custom_call.1} parent=43 // pred_region
          %304 = dma.done [#allocation9], 512
        $region60: #{tpu_custom_call.1} parent=43 // pred_fallthru
          _
        // Predicated region
        $region61: #{tpu_custom_call.1} parent=43 // pred_check
          %p305 = pneg %p131
        $region62: #{tpu_custom_call.1} parent=43 // pred_check_branch
          %307 = sbr.rel (%p305) target = $region64
        $region63: #{tpu_custom_call.1} parent=43 // pred_region
          %308 = dma.done [#allocation9], 2048
        $region64: #{tpu_custom_call.1} parent=43 // pred_fallthru
          _
        // Predicated region
        $region65: #{tpu_custom_call.1} parent=43 // pred_check
          %p309 = pneg %p152
        $region66: #{tpu_custom_call.1} parent=43 // pred_check_branch
          %311 = sbr.rel (%p309) target = $region68
        $region67: #{tpu_custom_call.1} parent=43 // pred_region
          %312 = dma.done [#allocation12], 64
        $region68: #{tpu_custom_call.1} parent=43 // pred_fallthru
          _
        %s313 = sand.u32 %s34, 1
        %s314 = scalar_lea.sflag [#allocation3], %s313
        %s315 = sand.u32 %s34, 1
        %s316 = smul.addr %s315, 16
        %s317 = scalar_lea.vmem [#allocation2], %s316
        %p318 = pneg %p47
        %p319 = pneg %p44
        %p320 = pneg %p68
        %p321 = pneg %p65
        %p322 = pneg %p89
        %p323 = pneg %p86
        %p324 = pneg %p110
        %p325 = pneg %p107
        %p326 = pneg %p131
        %p327 = pneg %p128
        %p328 = pneg %p152
        %p329 = pneg %p149
        %p330 = pneg %p178
        %p331 = pneg %p175
        %s332 = sand.u32 %s165, 1
        %s333 = scalar_lea.sflag [#allocation4], %s332
        %s334 = sand.u32 %s165, 1
        %s335 = smul.addr %s334, 16
        %s336 = scalar_lea.vmem [#allocation13], %s335
        %v337 = vld [vmem:[%s288] sm:$0xff]
        %v338 = vld [vmem:[%s288 + $0x8] sm:$0xff]
        %vm339 = vcmask 261120
        %v340 = vsel %vm339, %v337, 0.0
        %341 = vadd.xlane.f32.xlu0 %v340
        %v342 = vpop.xlane.xlu0 %341
        %v343 = vsel %vm339, %v338, 0.0
        %344 = vadd.xlane.f32.xlu0 %v343
        %v345 = vpop.xlane.xlu0 %344
        %v346 = vrcp.pop 32.0
        %v347 = vmul.f32 %v342, %v346
        %v348 = vmul.f32 %v345, %v346
        %v349 = vsub.f32 %v337, %v347
        %v350 = vsub.f32 %v338, %v348
        %v351 = vmul.f32 %v349, %v349
        %v352 = vmul.f32 %v350, %v350
        %v353 = vsel %vm339, %v351, 0.0
        %354 = vadd.xlane.f32.xlu0 %v353
        %v355 = vpop.xlane.xlu0 %354
        %v356 = vsel %vm339, %v352, 0.0
        %357 = vadd.xlane.f32.xlu0 %v356
        %v358 = vpop.xlane.xlu0 %357
        %v359 = vmul.f32 %v355, %v346
        %v360 = vmul.f32 %v358, %v346
        %v361 = vadd.f32 %v359, 1e-06
        %v362 = vadd.f32 %v360, 1e-06
        %v363 = vrsqrt.pop %v361
        %v364 = vrsqrt.pop %v362
        %v365 = vmul.f32 %v349, %v363
        %v366 = vmul.f32 %v350, %v364
        %v367 = vld [vmem:[#allocation5] sm:$0x1]
        %v368 = vlaneseq
        %v369 = vshrl.u32 %v368, 7
        %v370 = vsub.s32 0, %v369
        %v371 = vrot.slane %v367, %v370
        %v372 = vmul.f32 %v365, %v371
        %v373 = vmul.f32 %v366, %v371
        %v374 = vld [vmem:[#allocation7] sm:$0x1]
        %v375 = vlaneseq
        %v376 = vshrl.u32 %v375, 7
        %v377 = vsub.s32 0, %v376
        %v378 = vrot.slane %v374, %v377
        %v379 = vadd.f32 %v372, %v378
        %v380 = vadd.f32 %v373, %v378
        %v381 = vld [vmem:[#allocation8 + $0x2] sm:$0x1]
        %v382 = vlaneseq
        %v383 = vshrl.u32 %v382, 7
        %v384 = vsub.s32 0, %v383
        %v385 = vrot.slane %v381, %v384
        %v386 = vmul.f32 %v379, %v385
        %v387 = vmul.f32 %v380, %v385
        %v388 = vld [vmem:[#allocation8] sm:$0x1]
        %vm391 = vcmask 1041408
        %v392 = vrot.slane %v379, 6
        %v393 = vrot.slane %v380, 6
        %v394 = vsel %vm391, %v392, %v393
        %v397 = vsel %vm391, 0.0, %v392
        %v398 = vlaneseq
        %v399 = vshrl.u32 %v398, 7
        %v400 = vsub.s32 0, %v399
        %v401 = vrot.slane %v388, %v400
        %v402 = vmul.f32 %v397, %v401
        %v403 = vmul.f32 %v394, %v401
        %v404 = vadd.f32 %v386, %v402
        %v405 = vadd.f32 %v387, %v403
        %v406 = vld [vmem:[#allocation8 + $0x1] sm:$0x1]
        %vm407 = vcmask 1040384
        %v408 = vrot.slane %v379, 7
        %v409 = vrot.slane %v380, 7
        %v410 = vsel %vm407, %v408, %v409
        %v413 = vsel %vm407, 0.0, %v408
        %v414 = vlaneseq
        %v415 = vshrl.u32 %v414, 7
        %v416 = vsub.s32 0, %v415
        %v417 = vrot.slane %v406, %v416
        %v418 = vmul.f32 %v413, %v417
        %v419 = vmul.f32 %v410, %v417
        %v420 = vadd.f32 %v404, %v418
        %v421 = vadd.f32 %v405, %v419
        %v422 = vld [vmem:[#allocation8 + $0x3] sm:$0x1]
        %vm423 = vcmask 1046528
        %v424 = vrot.slane %v379, 1
        %v425 = vrot.slane %v380, 1
        %v426 = vsel %vm423, %v424, %v425
        %v429 = vsel %vm423, %v425, 0.0
        %v430 = vlaneseq
        %v431 = vshrl.u32 %v430, 7
        %v432 = vsub.s32 0, %v431
        %v433 = vrot.slane %v422, %v432
        %v434 = vmul.f32 %v426, %v433
        %v435 = vmul.f32 %v429, %v433
        %v436 = vadd.f32 %v420, %v434
        %v437 = vadd.f32 %v421, %v435
        %v438 = vld [vmem:[#allocation8 + $0x4] sm:$0x1]
        %vm439 = vcmask 1045504
        %v440 = vrot.slane %v379, 2
        %v441 = vrot.slane %v380, 2
        %v442 = vsel %vm439, %v440, %v441
        %v445 = vsel %vm439, %v441, 0.0
        %v446 = vlaneseq
        %v447 = vshrl.u32 %v446, 7
        %v448 = vsub.s32 0, %v447
        %v449 = vrot.slane %v438, %v448
        %v450 = vmul.f32 %v442, %v449
        %v451 = vmul.f32 %v445, %v449
        %v452 = vadd.f32 %v436, %v450
        %v453 = vadd.f32 %v437, %v451
        %v454 = vld [vmem:[#allocation10] sm:$0xff]
        %v455 = vld [vmem:[#allocation10 + $0x8] sm:$0xff]
        %v456 = vld [vmem:[#allocation10 + $0x10] sm:$0xff]
        %v457 = vld [vmem:[#allocation10 + $0x18] sm:$0xff]
        %v458 = vld [vmem:[#allocation11] sm:$0x1]
        %v459 = vlaneseq
        %v460 = vshrl.u32 %v459, 7
        %v461 = vsub.s32 0, %v460
        %v462 = vrot.slane %v458, %v461
        %v464 = vsel %vm339, %v452, 0
        %v467 = vsel %vm339, %v453, 0
        %469 = vmatprep.subr.mxu0 0.0
        %470 = vmatpush1.msra.mxu0 %v454
        %471 = vmatprep.subr.mxu0 0.0
        %472 = vmatpush1.msra.mxu0 %v455
        %473 = vmatprep.subr.mxu0 0.0
        %474 = vmatpush1.msra.mxu0 %v456
        %475 = vmatprep.subr.mxu0 0.0
        %476 = vmatpush1.msra.mxu0 %v457
        %477 = vmatprep.subr.mxu0 0.0
        %478 = vmatpush1.msra.mxu0 0.0
        %479 = vmatprep.subr.mxu0 0.0
        %480 = vmatpush1.msra.mxu0 0.0
        %481 = vmatprep.subr.mxu0 0.0
        %482 = vmatpush1.msra.mxu0 0.0
        %483 = vmatprep.subr.mxu0 0.0
        %484 = vmatpush1.msra.mxu0 0.0
        %485 = vmatprep.subr.mxu0 0.0
        %486 = vmatpush1.msra.mxu0 0.0
        %487 = vmatprep.subr.mxu0 0.0
        %488 = vmatpush1.msra.mxu0 0.0
        %489 = vmatprep.subr.mxu0 0.0
        %490 = vmatpush1.msra.mxu0 0.0
        %491 = vmatprep.subr.mxu0 0.0
        %492 = vmatpush1.msra.mxu0 0.0
        %493 = vmatprep.subr.mxu0 0.0
        %494 = vmatpush1.msra.mxu0 0.0
        %495 = vmatprep.subr.mxu0 0.0
        %496 = vmatpush1.msra.mxu0 0.0
        %497 = vmatprep.subr.mxu0 0.0
        %498 = vmatpush1.msra.mxu0 0.0
        %499 = vmatprep.subr.mxu0 0.0
        %500 = vmatpush1.msra.mxu0 0.0
        %501 = vmatprep.subr.mxu0 0.0
        %502 = vmatpush1.msra.mxu0 0.0
        %503 = vmatprep.subr.mxu0 0.0
        %504 = vmatpush1.msra.mxu0 0.0
        %505 = vmatprep.subr.mxu0 0.0
        %506 = vmatpush1.msra.mxu0 0.0
        %507 = vmatprep.subr.mxu0 0.0
        %508 = vmatpush1.msra.mxu0 0.0
        %509 = vmatprep.subr.mxu0 0.0
        %510 = vmatpush1.msra.mxu0 0.0
        %511 = vmatprep.subr.mxu0 0.0
        %512 = vmatpush1.msra.mxu0 0.0
        %513 = vmatprep.subr.mxu0 0.0
        %514 = vmatpush1.msra.mxu0 0.0
        %515 = vmatprep.subr.mxu0 0.0
        %516 = vmatpush1.msra.mxu0 0.0
        %517 = vmatprep.subr.mxu0 0.0
        %518 = vmatpush1.msra.mxu0 0.0
        %519 = vmatprep.subr.mxu0 0.0
        %520 = vmatpush1.msra.mxu0 0.0
        %521 = vmatprep.subr.mxu0 0.0
        %522 = vmatpush1.msra.mxu0 0.0
        %523 = vmatprep.subr.mxu0 0.0
        %524 = vmatpush1.msra.mxu0 0.0
        %525 = vmatprep.subr.mxu0 0.0
        %526 = vmatpush1.msra.mxu0 0.0
        %527 = vmatprep.subr.mxu0 0.0
        %528 = vmatpush1.msra.mxu0 0.0
        %529 = vmatprep.subr.mxu0 0.0
        %530 = vmatpush1.msra.mxu0 0.0
        %531 = vmatprep.subr.mxu0 0.0
        %532 = vmatpush1.msra.mxu0 0.0
        %533 = vmatprep.mubr.f32.mxu0 0.0
        %534 = vmatmul.mubr.f32.gmra.mrb[0].mxu0 %v464
        %v535 = vpop.f32.mrb[0].mxu0
        %v536 = vadd.f32 %v462, %v535
        %v537 = vpop.f32.mrb[0].mxu0
        %538 = vmatprep.mubr.f32.mxu0 0.0
        %539 = vmatmul.mubr.f32.gmra.mrb[0].mxu0 %v467
        %v540 = vpop.f32.mrb[0].mxu0
        %v541 = vadd.f32 %v462, %v540
        %v542 = vpop.f32.mrb[0].mxu0
        %543 = vdwg.mxu0
        %v544 = vmax.f32 %v536, 0.0
        %v545 = vmax.f32 %v541, 0.0
        %v546 = vadd.f32 %v544, %v337
        %v547 = vadd.f32 %v545, %v338
        %v548 = vsel %vm339, %v546, 0.0
        %549 = vadd.xlane.f32.xlu0 %v548
        %v550 = vpop.xlane.xlu0 %549
        %v551 = vsel %vm339, %v547, 0.0
        %552 = vadd.xlane.f32.xlu0 %v551
        %v553 = vpop.xlane.xlu0 %552
        %v554 = vmul.f32 %v550, %v346
        %v555 = vmul.f32 %v553, %v346
        %v556 = vsub.f32 %v546, %v554
        %v557 = vsub.f32 %v547, %v555
        %v558 = vmul.f32 %v556, %v556
        %v559 = vmul.f32 %v557, %v557
        %v560 = vsel %vm339, %v558, 0.0
        %561 = vadd.xlane.f32.xlu0 %v560
        %v562 = vpop.xlane.xlu0 %561
        %v563 = vsel %vm339, %v559, 0.0
        %564 = vadd.xlane.f32.xlu0 %v563
        %v565 = vpop.xlane.xlu0 %564
        %v566 = vmul.f32 %v562, %v346
        %v567 = vmul.f32 %v565, %v346
        %v568 = vadd.f32 %v566, 1e-06
        %v569 = vadd.f32 %v567, 1e-06
        %v570 = vrsqrt.pop %v568
        %v571 = vrsqrt.pop %v569
        %v572 = vmul.f32 %v556, %v570
        %v573 = vmul.f32 %v557, %v571
        %v574 = vld [vmem:[#allocation5 + $0x1] sm:$0x1]
        %v575 = vlaneseq
        %v576 = vshrl.u32 %v575, 7
        %v577 = vsub.s32 0, %v576
        %v578 = vrot.slane %v574, %v577
        %v579 = vmul.f32 %v572, %v578
        %v580 = vmul.f32 %v573, %v578
        %v581 = vld [vmem:[#allocation7 + $0x1] sm:$0x1]
        %v582 = vlaneseq
        %v583 = vshrl.u32 %v582, 7
        %v584 = vsub.s32 0, %v583
        %v585 = vrot.slane %v581, %v584
        %v586 = vadd.f32 %v579, %v585
        %v587 = vadd.f32 %v580, %v585
        %s588 = scalar_lea.vmem [#allocation8], 8
        %v589 = vld [vmem:[%s588 + $0x2] sm:$0x1]
        %v590 = vlaneseq
        %v591 = vshrl.u32 %v590, 7
        %v592 = vsub.s32 0, %v591
        %v593 = vrot.slane %v589, %v592
        %v594 = vmul.f32 %v586, %v593
        %v595 = vmul.f32 %v587, %v593
        %v596 = vld [vmem:[%s588] sm:$0x1]
        %v599 = vrot.slane %v586, 6
        %v600 = vrot.slane %v587, 6
        %v601 = vsel %vm391, %v599, %v600
        %v604 = vsel %vm391, 0.0, %v599
        %v605 = vlaneseq
        %v606 = vshrl.u32 %v605, 7
        %v607 = vsub.s32 0, %v606
        %v608 = vrot.slane %v596, %v607
        %v609 = vmul.f32 %v604, %v608
        %v610 = vmul.f32 %v601, %v608
        %v611 = vadd.f32 %v594, %v609
        %v612 = vadd.f32 %v595, %v610
        %v613 = vld [vmem:[%s588 + $0x1] sm:$0x1]
        %v614 = vrot.slane %v586, 7
        %v615 = vrot.slane %v587, 7
        %v616 = vsel %vm407, %v614, %v615
        %v619 = vsel %vm407, 0.0, %v614
        %v620 = vlaneseq
        %v621 = vshrl.u32 %v620, 7
        %v622 = vsub.s32 0, %v621
        %v623 = vrot.slane %v613, %v622
        %v624 = vmul.f32 %v619, %v623
        %v625 = vmul.f32 %v616, %v623
        %v626 = vadd.f32 %v611, %v624
        %v627 = vadd.f32 %v612, %v625
        %v628 = vld [vmem:[%s588 + $0x3] sm:$0x1]
        %v629 = vrot.slane %v586, 1
        %v630 = vrot.slane %v587, 1
        %v631 = vsel %vm423, %v629, %v630
        %v634 = vsel %vm423, %v630, 0.0
        %v635 = vlaneseq
        %v636 = vshrl.u32 %v635, 7
        %v637 = vsub.s32 0, %v636
        %v638 = vrot.slane %v628, %v637
        %v639 = vmul.f32 %v631, %v638
        %v640 = vmul.f32 %v634, %v638
        %v641 = vadd.f32 %v626, %v639
        %v642 = vadd.f32 %v627, %v640
        %v643 = vld [vmem:[%s588 + $0x4] sm:$0x1]
        %v644 = vrot.slane %v586, 2
        %v645 = vrot.slane %v587, 2
        %v646 = vsel %vm439, %v644, %v645
        %v649 = vsel %vm439, %v645, 0.0
        %v650 = vlaneseq
        %v651 = vshrl.u32 %v650, 7
        %v652 = vsub.s32 0, %v651
        %v653 = vrot.slane %v643, %v652
        %v654 = vmul.f32 %v646, %v653
        %v655 = vmul.f32 %v649, %v653
        %v656 = vadd.f32 %v641, %v654
        %v657 = vadd.f32 %v642, %v655
        %s658 = scalar_lea.vmem [#allocation10], 32
        %v659 = vld [vmem:[%s658] sm:$0xff]
        %v660 = vld [vmem:[%s658 + $0x8] sm:$0xff]
        %v661 = vld [vmem:[%s658 + $0x10] sm:$0xff]
        %v662 = vld [vmem:[%s658 + $0x18] sm:$0xff]
        %v663 = vld [vmem:[#allocation11 + $0x1] sm:$0x1]
        %v664 = vlaneseq
        %v665 = vshrl.u32 %v664, 7
        %v666 = vsub.s32 0, %v665
        %v667 = vrot.slane %v663, %v666
        %v669 = vsel %vm339, %v656, 0
        %v672 = vsel %vm339, %v657, 0
        %674 = vmatprep.subr.mxu0 0.0
        %675 = vmatpush1.msra.mxu0 %v659
        %676 = vmatprep.subr.mxu0 0.0
        %677 = vmatpush1.msra.mxu0 %v660
        %678 = vmatprep.subr.mxu0 0.0
        %679 = vmatpush1.msra.mxu0 %v661
        %680 = vmatprep.subr.mxu0 0.0
        %681 = vmatpush1.msra.mxu0 %v662
        %682 = vmatprep.subr.mxu0 0.0
        %683 = vmatpush1.msra.mxu0 0.0
        %684 = vmatprep.subr.mxu0 0.0
        %685 = vmatpush1.msra.mxu0 0.0
        %686 = vmatprep.subr.mxu0 0.0
        %687 = vmatpush1.msra.mxu0 0.0
        %688 = vmatprep.subr.mxu0 0.0
        %689 = vmatpush1.msra.mxu0 0.0
        %690 = vmatprep.subr.mxu0 0.0
        %691 = vmatpush1.msra.mxu0 0.0
        %692 = vmatprep.subr.mxu0 0.0
        %693 = vmatpush1.msra.mxu0 0.0
        %694 = vmatprep.subr.mxu0 0.0
        %695 = vmatpush1.msra.mxu0 0.0
        %696 = vmatprep.subr.mxu0 0.0
        %697 = vmatpush1.msra.mxu0 0.0
        %698 = vmatprep.subr.mxu0 0.0
        %699 = vmatpush1.msra.mxu0 0.0
        %700 = vmatprep.subr.mxu0 0.0
        %701 = vmatpush1.msra.mxu0 0.0
        %702 = vmatprep.subr.mxu0 0.0
        %703 = vmatpush1.msra.mxu0 0.0
        %704 = vmatprep.subr.mxu0 0.0
        %705 = vmatpush1.msra.mxu0 0.0
        %706 = vmatprep.subr.mxu0 0.0
        %707 = vmatpush1.msra.mxu0 0.0
        %708 = vmatprep.subr.mxu0 0.0
        %709 = vmatpush1.msra.mxu0 0.0
        %710 = vmatprep.subr.mxu0 0.0
        %711 = vmatpush1.msra.mxu0 0.0
        %712 = vmatprep.subr.mxu0 0.0
        %713 = vmatpush1.msra.mxu0 0.0
        %714 = vmatprep.subr.mxu0 0.0
        %715 = vmatpush1.msra.mxu0 0.0
        %716 = vmatprep.subr.mxu0 0.0
        %717 = vmatpush1.msra.mxu0 0.0
        %718 = vmatprep.subr.mxu0 0.0
        %719 = vmatpush1.msra.mxu0 0.0
        %720 = vmatprep.subr.mxu0 0.0
        %721 = vmatpush1.msra.mxu0 0.0
        %722 = vmatprep.subr.mxu0 0.0
        %723 = vmatpush1.msra.mxu0 0.0
        %724 = vmatprep.subr.mxu0 0.0
        %725 = vmatpush1.msra.mxu0 0.0
        %726 = vmatprep.subr.mxu0 0.0
        %727 = vmatpush1.msra.mxu0 0.0
        %728 = vmatprep.subr.mxu0 0.0
        %729 = vmatpush1.msra.mxu0 0.0
        %730 = vmatprep.subr.mxu0 0.0
        %731 = vmatpush1.msra.mxu0 0.0
        %732 = vmatprep.subr.mxu0 0.0
        %733 = vmatpush1.msra.mxu0 0.0
        %734 = vmatprep.subr.mxu0 0.0
        %735 = vmatpush1.msra.mxu0 0.0
        %736 = vmatprep.subr.mxu0 0.0
        %737 = vmatpush1.msra.mxu0 0.0
        %738 = vmatprep.mubr.f32.mxu0 0.0
        %739 = vmatmul.mubr.f32.gmra.mrb[0].mxu0 %v669
        %v740 = vpop.f32.mrb[0].mxu0
        %v741 = vadd.f32 %v667, %v740
        %v742 = vpop.f32.mrb[0].mxu0
        %743 = vmatprep.mubr.f32.mxu0 0.0
        %744 = vmatmul.mubr.f32.gmra.mrb[0].mxu0 %v672
        %v745 = vpop.f32.mrb[0].mxu0
        %v746 = vadd.f32 %v667, %v745
        %v747 = vpop.f32.mrb[0].mxu0
        %748 = vdwg.mxu0
        %v749 = vmax.f32 %v741, 0.0
        %v750 = vmax.f32 %v746, 0.0
        %v751 = vadd.f32 %v749, %v546
        %v752 = vadd.f32 %v750, %v547
        %v753 = vsel %vm339, %v751, 0.0
        %754 = vadd.xlane.f32.xlu0 %v753
        %v755 = vpop.xlane.xlu0 %754
        %v756 = vsel %vm339, %v752, 0.0
        %757 = vadd.xlane.f32.xlu0 %v756
        %v758 = vpop.xlane.xlu0 %757
        %v759 = vmul.f32 %v755, %v346
        %v760 = vmul.f32 %v758, %v346
        %v761 = vsub.f32 %v751, %v759
        %v762 = vsub.f32 %v752, %v760
        %v763 = vmul.f32 %v761, %v761
        %v764 = vmul.f32 %v762, %v762
        %v765 = vsel %vm339, %v763, 0.0
        %766 = vadd.xlane.f32.xlu0 %v765
        %v767 = vpop.xlane.xlu0 %766
        %v768 = vsel %vm339, %v764, 0.0
        %769 = vadd.xlane.f32.xlu0 %v768
        %v770 = vpop.xlane.xlu0 %769
        %v771 = vmul.f32 %v767, %v346
        %v772 = vmul.f32 %v770, %v346
        %v773 = vadd.f32 %v771, 1e-06
        %v774 = vadd.f32 %v772, 1e-06
        %v775 = vrsqrt.pop %v773
        %v776 = vrsqrt.pop %v774
        %v777 = vmul.f32 %v761, %v775
        %v778 = vmul.f32 %v762, %v776
        %v779 = vld [vmem:[#allocation5 + $0x2] sm:$0x1]
        %v780 = vlaneseq
        %v781 = vshrl.u32 %v780, 7
        %v782 = vsub.s32 0, %v781
        %v783 = vrot.slane %v779, %v782
        %v784 = vmul.f32 %v777, %v783
        %v785 = vmul.f32 %v778, %v783
        %v786 = vld [vmem:[#allocation7 + $0x2] sm:$0x1]
        %v787 = vlaneseq
        %v788 = vshrl.u32 %v787, 7
        %v789 = vsub.s32 0, %v788
        %v790 = vrot.slane %v786, %v789
        %v791 = vadd.f32 %v784, %v790
        %v792 = vadd.f32 %v785, %v790
        %s793 = scalar_lea.vmem [#allocation8], 16
        %v794 = vld [vmem:[%s793 + $0x2] sm:$0x1]
        %v795 = vlaneseq
        %v796 = vshrl.u32 %v795, 7
        %v797 = vsub.s32 0, %v796
        %v798 = vrot.slane %v794, %v797
        %v799 = vmul.f32 %v791, %v798
        %v800 = vmul.f32 %v792, %v798
        %v801 = vld [vmem:[%s793] sm:$0x1]
        %v804 = vrot.slane %v791, 6
        %v805 = vrot.slane %v792, 6
        %v806 = vsel %vm391, %v804, %v805
        %v809 = vsel %vm391, 0.0, %v804
        %v810 = vlaneseq
        %v811 = vshrl.u32 %v810, 7
        %v812 = vsub.s32 0, %v811
        %v813 = vrot.slane %v801, %v812
        %v814 = vmul.f32 %v809, %v813
        %v815 = vmul.f32 %v806, %v813
        %v816 = vadd.f32 %v799, %v814
        %v817 = vadd.f32 %v800, %v815
        %v818 = vld [vmem:[%s793 + $0x1] sm:$0x1]
        %v819 = vrot.slane %v791, 7
        %v820 = vrot.slane %v792, 7
        %v821 = vsel %vm407, %v819, %v820
        %v824 = vsel %vm407, 0.0, %v819
        %v825 = vlaneseq
        %v826 = vshrl.u32 %v825, 7
        %v827 = vsub.s32 0, %v826
        %v828 = vrot.slane %v818, %v827
        %v829 = vmul.f32 %v824, %v828
        %v830 = vmul.f32 %v821, %v828
        %v831 = vadd.f32 %v816, %v829
        %v832 = vadd.f32 %v817, %v830
        %v833 = vld [vmem:[%s793 + $0x3] sm:$0x1]
        %v834 = vrot.slane %v791, 1
        %v835 = vrot.slane %v792, 1
        %v836 = vsel %vm423, %v834, %v835
        %v839 = vsel %vm423, %v835, 0.0
        %v840 = vlaneseq
        %v841 = vshrl.u32 %v840, 7
        %v842 = vsub.s32 0, %v841
        %v843 = vrot.slane %v833, %v842
        %v844 = vmul.f32 %v836, %v843
        %v845 = vmul.f32 %v839, %v843
        %v846 = vadd.f32 %v831, %v844
        %v847 = vadd.f32 %v832, %v845
        %v848 = vld [vmem:[%s793 + $0x4] sm:$0x1]
        %v849 = vrot.slane %v791, 2
        %v850 = vrot.slane %v792, 2
        %v851 = vsel %vm439, %v849, %v850
        %v854 = vsel %vm439, %v850, 0.0
        %v855 = vlaneseq
        %v856 = vshrl.u32 %v855, 7
        %v857 = vsub.s32 0, %v856
        %v858 = vrot.slane %v848, %v857
        %v859 = vmul.f32 %v851, %v858
        %v860 = vmul.f32 %v854, %v858
        %v861 = vadd.f32 %v846, %v859
        %v862 = vadd.f32 %v847, %v860
        %s863 = scalar_lea.vmem [#allocation10], 64
        %v864 = vld [vmem:[%s863] sm:$0xff]
        %v865 = vld [vmem:[%s863 + $0x8] sm:$0xff]
        %v866 = vld [vmem:[%s863 + $0x10] sm:$0xff]
        %v867 = vld [vmem:[%s863 + $0x18] sm:$0xff]
        %v868 = vld [vmem:[#allocation11 + $0x2] sm:$0x1]
        %v869 = vlaneseq
        %v870 = vshrl.u32 %v869, 7
        %v871 = vsub.s32 0, %v870
        %v872 = vrot.slane %v868, %v871
        %v874 = vsel %vm339, %v861, 0
        %v877 = vsel %vm339, %v862, 0
        %879 = vmatprep.subr.mxu0 0.0
        %880 = vmatpush1.msra.mxu0 %v864
        %881 = vmatprep.subr.mxu0 0.0
        %882 = vmatpush1.msra.mxu0 %v865
        %883 = vmatprep.subr.mxu0 0.0
        %884 = vmatpush1.msra.mxu0 %v866
        %885 = vmatprep.subr.mxu0 0.0
        %886 = vmatpush1.msra.mxu0 %v867
        %887 = vmatprep.subr.mxu0 0.0
        %888 = vmatpush1.msra.mxu0 0.0
        %889 = vmatprep.subr.mxu0 0.0
        %890 = vmatpush1.msra.mxu0 0.0
        %891 = vmatprep.subr.mxu0 0.0
        %892 = vmatpush1.msra.mxu0 0.0
        %893 = vmatprep.subr.mxu0 0.0
        %894 = vmatpush1.msra.mxu0 0.0
        %895 = vmatprep.subr.mxu0 0.0
        %896 = vmatpush1.msra.mxu0 0.0
        %897 = vmatprep.subr.mxu0 0.0
        %898 = vmatpush1.msra.mxu0 0.0
        %899 = vmatprep.subr.mxu0 0.0
        %900 = vmatpush1.msra.mxu0 0.0
        %901 = vmatprep.subr.mxu0 0.0
        %902 = vmatpush1.msra.mxu0 0.0
        %903 = vmatprep.subr.mxu0 0.0
        %904 = vmatpush1.msra.mxu0 0.0
        %905 = vmatprep.subr.mxu0 0.0
        %906 = vmatpush1.msra.mxu0 0.0
        %907 = vmatprep.subr.mxu0 0.0
        %908 = vmatpush1.msra.mxu0 0.0
        %909 = vmatprep.subr.mxu0 0.0
        %910 = vmatpush1.msra.mxu0 0.0
        %911 = vmatprep.subr.mxu0 0.0
        %912 = vmatpush1.msra.mxu0 0.0
        %913 = vmatprep.subr.mxu0 0.0
        %914 = vmatpush1.msra.mxu0 0.0
        %915 = vmatprep.subr.mxu0 0.0
        %916 = vmatpush1.msra.mxu0 0.0
        %917 = vmatprep.subr.mxu0 0.0
        %918 = vmatpush1.msra.mxu0 0.0
        %919 = vmatprep.subr.mxu0 0.0
        %920 = vmatpush1.msra.mxu0 0.0
        %921 = vmatprep.subr.mxu0 0.0
        %922 = vmatpush1.msra.mxu0 0.0
        %923 = vmatprep.subr.mxu0 0.0
        %924 = vmatpush1.msra.mxu0 0.0
        %925 = vmatprep.subr.mxu0 0.0
        %926 = vmatpush1.msra.mxu0 0.0
        %927 = vmatprep.subr.mxu0 0.0
        %928 = vmatpush1.msra.mxu0 0.0
        %929 = vmatprep.subr.mxu0 0.0
        %930 = vmatpush1.msra.mxu0 0.0
        %931 = vmatprep.subr.mxu0 0.0
        %932 = vmatpush1.msra.mxu0 0.0
        %933 = vmatprep.subr.mxu0 0.0
        %934 = vmatpush1.msra.mxu0 0.0
        %935 = vmatprep.subr.mxu0 0.0
        %936 = vmatpush1.msra.mxu0 0.0
        %937 = vmatprep.subr.mxu0 0.0
        %938 = vmatpush1.msra.mxu0 0.0
        %939 = vmatprep.subr.mxu0 0.0
        %940 = vmatpush1.msra.mxu0 0.0
        %941 = vmatprep.subr.mxu0 0.0
        %942 = vmatpush1.msra.mxu0 0.0
        %943 = vmatprep.mubr.f32.mxu0 0.0
        %944 = vmatmul.mubr.f32.gmra.mrb[0].mxu0 %v874
        %v945 = vpop.f32.mrb[0].mxu0
        %v946 = vadd.f32 %v872, %v945
        %v947 = vpop.f32.mrb[0].mxu0
        %948 = vmatprep.mubr.f32.mxu0 0.0
        %949 = vmatmul.mubr.f32.gmra.mrb[0].mxu0 %v877
        %v950 = vpop.f32.mrb[0].mxu0
        %v951 = vadd.f32 %v872, %v950
        %v952 = vpop.f32.mrb[0].mxu0
        %953 = vdwg.mxu0
        %v954 = vmax.f32 %v946, 0.0
        %v955 = vmax.f32 %v951, 0.0
        %v956 = vadd.f32 %v954, %v751
        %v957 = vadd.f32 %v955, %v752
        %v958 = vsel %vm339, %v956, 0.0
        %959 = vadd.xlane.f32.xlu0 %v958
        %v960 = vpop.xlane.xlu0 %959
        %v961 = vsel %vm339, %v957, 0.0
        %962 = vadd.xlane.f32.xlu0 %v961
        %v963 = vpop.xlane.xlu0 %962
        %v964 = vmul.f32 %v960, %v346
        %v965 = vmul.f32 %v963, %v346
        %v966 = vsub.f32 %v956, %v964
        %v967 = vsub.f32 %v957, %v965
        %v968 = vmul.f32 %v966, %v966
        %v969 = vmul.f32 %v967, %v967
        %v970 = vsel %vm339, %v968, 0.0
        %971 = vadd.xlane.f32.xlu0 %v970
        %v972 = vpop.xlane.xlu0 %971
        %v973 = vsel %vm339, %v969, 0.0
        %974 = vadd.xlane.f32.xlu0 %v973
        %v975 = vpop.xlane.xlu0 %974
        %v976 = vmul.f32 %v972, %v346
        %v977 = vmul.f32 %v975, %v346
        %v978 = vadd.f32 %v976, 1e-06
        %v979 = vadd.f32 %v977, 1e-06
        %v980 = vrsqrt.pop %v978
        %v981 = vrsqrt.pop %v979
        %v982 = vmul.f32 %v966, %v980
        %v983 = vmul.f32 %v967, %v981
        %v984 = vld [vmem:[#allocation5 + $0x3] sm:$0x1]
        %v985 = vlaneseq
        %v986 = vshrl.u32 %v985, 7
        %v987 = vsub.s32 0, %v986
        %v988 = vrot.slane %v984, %v987
        %v989 = vmul.f32 %v982, %v988
        %v990 = vmul.f32 %v983, %v988
        %v991 = vld [vmem:[#allocation7 + $0x3] sm:$0x1]
        %v992 = vlaneseq
        %v993 = vshrl.u32 %v992, 7
        %v994 = vsub.s32 0, %v993
        %v995 = vrot.slane %v991, %v994
        %v996 = vadd.f32 %v989, %v995
        %v997 = vadd.f32 %v990, %v995
        %s998 = scalar_lea.vmem [#allocation8], 24
        %v999 = vld [vmem:[%s998 + $0x2] sm:$0x1]
        %v1000 = vlaneseq
        %v1001 = vshrl.u32 %v1000, 7
        %v1002 = vsub.s32 0, %v1001
        %v1003 = vrot.slane %v999, %v1002
        %v1004 = vmul.f32 %v996, %v1003
        %v1005 = vmul.f32 %v997, %v1003
        %v1006 = vld [vmem:[%s998] sm:$0x1]
        %v1009 = vrot.slane %v996, 6
        %v1010 = vrot.slane %v997, 6
        %v1011 = vsel %vm391, %v1009, %v1010
        %v1014 = vsel %vm391, 0.0, %v1009
        %v1015 = vlaneseq
        %v1016 = vshrl.u32 %v1015, 7
        %v1017 = vsub.s32 0, %v1016
        %v1018 = vrot.slane %v1006, %v1017
        %v1019 = vmul.f32 %v1014, %v1018
        %v1020 = vmul.f32 %v1011, %v1018
        %v1021 = vadd.f32 %v1004, %v1019
        %v1022 = vadd.f32 %v1005, %v1020
        %v1023 = vld [vmem:[%s998 + $0x1] sm:$0x1]
        %v1024 = vrot.slane %v996, 7
        %v1025 = vrot.slane %v997, 7
        %v1026 = vsel %vm407, %v1024, %v1025
        %v1029 = vsel %vm407, 0.0, %v1024
        %v1030 = vlaneseq
        %v1031 = vshrl.u32 %v1030, 7
        %v1032 = vsub.s32 0, %v1031
        %v1033 = vrot.slane %v1023, %v1032
        %v1034 = vmul.f32 %v1029, %v1033
        %v1035 = vmul.f32 %v1026, %v1033
        %v1036 = vadd.f32 %v1021, %v1034
        %v1037 = vadd.f32 %v1022, %v1035
        %v1038 = vld [vmem:[%s998 + $0x3] sm:$0x1]
        %v1039 = vrot.slane %v996, 1
        %v1040 = vrot.slane %v997, 1
        %v1041 = vsel %vm423, %v1039, %v1040
        %v1044 = vsel %vm423, %v1040, 0.0
        %v1045 = vlaneseq
        %v1046 = vshrl.u32 %v1045, 7
        %v1047 = vsub.s32 0, %v1046
        %v1048 = vrot.slane %v1038, %v1047
        %v1049 = vmul.f32 %v1041, %v1048
        %v1050 = vmul.f32 %v1044, %v1048
        %v1051 = vadd.f32 %v1036, %v1049
        %v1052 = vadd.f32 %v1037, %v1050
        %v1053 = vld [vmem:[%s998 + $0x4] sm:$0x1]
        %v1054 = vrot.slane %v996, 2
        %v1055 = vrot.slane %v997, 2
        %v1056 = vsel %vm439, %v1054, %v1055
        %v1059 = vsel %vm439, %v1055, 0.0
        %v1060 = vlaneseq
        %v1061 = vshrl.u32 %v1060, 7
        %v1062 = vsub.s32 0, %v1061
        %v1063 = vrot.slane %v1053, %v1062
        %v1064 = vmul.f32 %v1056, %v1063
        %v1065 = vmul.f32 %v1059, %v1063
        %v1066 = vadd.f32 %v1051, %v1064
        %v1067 = vadd.f32 %v1052, %v1065
        %s1068 = scalar_lea.vmem [#allocation10], 96
        %v1069 = vld [vmem:[%s1068] sm:$0xff]
        %v1070 = vld [vmem:[%s1068 + $0x8] sm:$0xff]
        %v1071 = vld [vmem:[%s1068 + $0x10] sm:$0xff]
        %v1072 = vld [vmem:[%s1068 + $0x18] sm:$0xff]
        %v1073 = vld [vmem:[#allocation11 + $0x3] sm:$0x1]
        %v1074 = vlaneseq
        %v1075 = vshrl.u32 %v1074, 7
        %v1076 = vsub.s32 0, %v1075
        %v1077 = vrot.slane %v1073, %v1076
        %v1079 = vsel %vm339, %v1066, 0
        %v1082 = vsel %vm339, %v1067, 0
        %1084 = vmatprep.subr.mxu0 0.0
        %1085 = vmatpush1.msra.mxu0 %v1069
        %1086 = vmatprep.subr.mxu0 0.0
        %1087 = vmatpush1.msra.mxu0 %v1070
        %1088 = vmatprep.subr.mxu0 0.0
        %1089 = vmatpush1.msra.mxu0 %v1071
        %1090 = vmatprep.subr.mxu0 0.0
        %1091 = vmatpush1.msra.mxu0 %v1072
        %1092 = vmatprep.subr.mxu0 0.0
        %1093 = vmatpush1.msra.mxu0 0.0
        %1094 = vmatprep.subr.mxu0 0.0
        %1095 = vmatpush1.msra.mxu0 0.0
        %1096 = vmatprep.subr.mxu0 0.0
        %1097 = vmatpush1.msra.mxu0 0.0
        %1098 = vmatprep.subr.mxu0 0.0
        %1099 = vmatpush1.msra.mxu0 0.0
        %1100 = vmatprep.subr.mxu0 0.0
        %1101 = vmatpush1.msra.mxu0 0.0
        %1102 = vmatprep.subr.mxu0 0.0
        %1103 = vmatpush1.msra.mxu0 0.0
        %1104 = vmatprep.subr.mxu0 0.0
        %1105 = vmatpush1.msra.mxu0 0.0
        %1106 = vmatprep.subr.mxu0 0.0
        %1107 = vmatpush1.msra.mxu0 0.0
        %1108 = vmatprep.subr.mxu0 0.0
        %1109 = vmatpush1.msra.mxu0 0.0
        %1110 = vmatprep.subr.mxu0 0.0
        %1111 = vmatpush1.msra.mxu0 0.0
        %1112 = vmatprep.subr.mxu0 0.0
        %1113 = vmatpush1.msra.mxu0 0.0
        %1114 = vmatprep.subr.mxu0 0.0
        %1115 = vmatpush1.msra.mxu0 0.0
        %1116 = vmatprep.subr.mxu0 0.0
        %1117 = vmatpush1.msra.mxu0 0.0
        %1118 = vmatprep.subr.mxu0 0.0
        %1119 = vmatpush1.msra.mxu0 0.0
        %1120 = vmatprep.subr.mxu0 0.0
        %1121 = vmatpush1.msra.mxu0 0.0
        %1122 = vmatprep.subr.mxu0 0.0
        %1123 = vmatpush1.msra.mxu0 0.0
        %1124 = vmatprep.subr.mxu0 0.0
        %1125 = vmatpush1.msra.mxu0 0.0
        %1126 = vmatprep.subr.mxu0 0.0
        %1127 = vmatpush1.msra.mxu0 0.0
        %1128 = vmatprep.subr.mxu0 0.0
        %1129 = vmatpush1.msra.mxu0 0.0
        %1130 = vmatprep.subr.mxu0 0.0
        %1131 = vmatpush1.msra.mxu0 0.0
        %1132 = vmatprep.subr.mxu0 0.0
        %1133 = vmatpush1.msra.mxu0 0.0
        %1134 = vmatprep.subr.mxu0 0.0
        %1135 = vmatpush1.msra.mxu0 0.0
        %1136 = vmatprep.subr.mxu0 0.0
        %1137 = vmatpush1.msra.mxu0 0.0
        %1138 = vmatprep.subr.mxu0 0.0
        %1139 = vmatpush1.msra.mxu0 0.0
        %1140 = vmatprep.subr.mxu0 0.0
        %1141 = vmatpush1.msra.mxu0 0.0
        %1142 = vmatprep.subr.mxu0 0.0
        %1143 = vmatpush1.msra.mxu0 0.0
        %1144 = vmatprep.subr.mxu0 0.0
        %1145 = vmatpush1.msra.mxu0 0.0
        %1146 = vmatprep.subr.mxu0 0.0
        %1147 = vmatpush1.msra.mxu0 0.0
        %1148 = vmatprep.mubr.f32.mxu0 0.0
        %1149 = vmatmul.mubr.f32.gmra.mrb[0].mxu0 %v1079
        %v1150 = vpop.f32.mrb[0].mxu0
        %v1151 = vadd.f32 %v1077, %v1150
        %v1152 = vpop.f32.mrb[0].mxu0
        %1153 = vmatprep.mubr.f32.mxu0 0.0
        %1154 = vmatmul.mubr.f32.gmra.mrb[0].mxu0 %v1082
        %v1155 = vpop.f32.mrb[0].mxu0
        %v1156 = vadd.f32 %v1077, %v1155
        %v1157 = vpop.f32.mrb[0].mxu0
        %1158 = vdwg.mxu0
        %v1159 = vmax.f32 %v1151, 0.0
        %v1160 = vmax.f32 %v1156, 0.0
        %v1161 = vadd.f32 %v1159, %v956
        %v1162 = vadd.f32 %v1160, %v957
        %1163 = vst.msk [vmem:[%s336] sm:$0xff] %vm339, %v1161
        %1164 = vst.msk [vmem:[%s336 + $0x8] sm:$0xff] %vm339, %v1162
        %s1165 = sand.u32 %s165, 1
        %s1166 = scalar_lea.sflag [#allocation4], %s1165
        %s1167 = sand.u32 %s165, 1
        %s1168 = smul.addr %s1167, 16
        %s1169 = scalar_lea.vmem [#allocation13], %s1168
        // Predicated region
        $region69: #{tpu_custom_call.1} parent=43 // pred_check
          %p1170 = pneg %p175
        $region70: #{tpu_custom_call.1} parent=43 // pred_check_branch
          %1172 = sbr.rel (%p1170) target = $region72
        $region71: #{tpu_custom_call.1} parent=43 // pred_region
          %s1174 = ssub.s32 256, 256
          %1175 = vsyncadd %s1166, %s1174
          %s1176 = smul.addr %s26, 2
          %s1177 = smul.addr %s1176, 128
          %s1178 = scalar_lea.hbm %s6, %s1177
          %s1179 = sshll.u32 %s1169, 4
          %s1180 = int_to_ptr.vmem [resolvable:$true] %s1179
          %1185 = dma.vmem_to_hbm [thread:$0]  %s1180, 256, %s1178, %s1166, 128, 128, 8
        $region72: #{tpu_custom_call.1} parent=43 // pred_fallthru
          _
      $region44: #{tpu_custom_call.1} parent=5 // pred_fallthru
        _
      %p1186 = scmp.le.s32.totalorder 2, %s21
      // Predicated region
      $region73: #{tpu_custom_call.1} parent=5 // pred_check
        %p1187 = pneg %p1186
      $region74: #{tpu_custom_call.1} parent=5 // pred_check_branch
        %1189 = sbr.rel (%p1187) target = $region76
      $region75: #{tpu_custom_call.1} parent=5 // pred_region
        %s1190 = ssub.s32 %s21, 2
        // Predicated region
        $region77: #{tpu_custom_call.1} parent=75 // pred_check
          %p1191 = pneg %p181
        $region78: #{tpu_custom_call.1} parent=75 // pred_check_branch
          %1193 = sbr.rel (%p1191) target = $region80
        $region79: #{tpu_custom_call.1} parent=75 // pred_region
          %s1194 = sand.u32 %s166, 1
          %s1195 = scalar_lea.sflag [#allocation4], %s1194
          %s1196 = sand.u32 %s166, 1
          %s1197 = smul.addr %s1196, 16
          %s1198 = scalar_lea.vmem [#allocation13], %s1197
          %1199 = dma.done %s1195, 256
        $region80: #{tpu_custom_call.1} parent=75 // pred_fallthru
          _
      $region76: #{tpu_custom_call.1} parent=5 // pred_fallthru
        _
    $region6: #{tpu_custom_call.1} parent=1 // loop_footer
      %s25 = sadd.s32 1, %s21
    $region7: #{tpu_custom_call.1} parent=1 // loop_footer_branch
      %20 = sbr.rel target = $region3
    $region8: #{tpu_custom_call.1} parent=1 // loop_exit
      _
    %1200 = vsyncpa [#allocation3], 1
    %s1201 = scalar_lea.sflag [#allocation3], 1
    %1202 = vsyncpa %s1201, 1
    %1203 = vsyncpa [#allocation6], 1
    %1204 = vsyncpa [#allocation9], 1
    %1205 = vsyncpa [#allocation12], 1
    %1206 = vsyncpa [#allocation4], 1
    %s1207 = scalar_lea.sflag [#allocation4], 1
    %1208 = vsyncpa %s1207, 1

</llo_original>
